<compile_context>
chip_gen: v7x
topology: tpu7x:2x2x1
jax: 0.10.0
libtpu: 0.0.40
codegen_flags: <defaults>
</compile_context>

<pallas_src>
import functools

import jax
import jax.numpy as jnp
from jax.experimental import pallas as pl
from jax.experimental.pallas import tpu as pltpu


def _round_up(x, m):
    return (x + m - 1) // m * m


# ----------------------------------------------------------------------------- kernel
def _lstm_custom_kernel(
    x_cat_ref, x_num_ref,
    emb_w0_ref, num_w0_ref, b0_ref,
    wr_ref, br_ref,
    bn_a_ref, bn_b_ref, ow_ref, ob_ref,
    out_ref,
    *, n_rest,
):
    Bb, L = x_cat_ref.shape
    V_pad = emb_w0_ref.shape[0]
    six_h = b0_ref.shape[1]
    two_h = six_h // 3
    four_h = 2 * two_h

    # --- nn.EmbeddingBag(mode='mean', padding_idx=0) as a scaled bag-count matmul ---
    # The embedding table is folded into layer 0's weights at pack time; its
    # padding_idx row is exactly zero (asserted at pack time), so padding hits need no
    # mask here.  counts (number of non-padding indices) = L - (#hits on index 0).
    x_cat = x_cat_ref[...]
    iota_v = jax.lax.broadcasted_iota(jnp.int32, (Bb, V_pad), 1)
    bag = jnp.zeros((Bb, V_pad), jnp.int32)
    for l in range(L):                                   # L small & static -> unrolled
        bag = bag + (iota_v == x_cat[:, l:l + 1]).astype(jnp.int32)
    counts = (L - bag[:, 0:1]).astype(jnp.float32)
    bag_scaled = bag.astype(jnp.float32) * (1.0 / jnp.maximum(counts, 1.0))

    # --- layer 0 gates: folded cat-embedding + folded numerical-embedding matmuls ---
    gates = (jnp.dot(bag_scaled, emb_w0_ref[...], preferred_element_type=jnp.float32)
             + jnp.dot(x_num_ref[...], num_w0_ref[...], preferred_element_type=jnp.float32)
             + b0_ref[...])

    # --- bidirectional LSTM, seq_len == 1, h0 = c0 = 0 ---
    # W_hh and the forget gate are dead (h0 = c0 = 0) and removed at pack time.
    # Packed lane layout: [i_f | i_b | o_f | o_b | g_f | g_b], each H_pad (=64+) lanes,
    # so every slice below lands on a 128-lane boundary.  Padded gate lanes give h = 0.
    def gates_to_h(g_all):
        sig = jax.nn.sigmoid(g_all[:, :four_h])          # i (both dirs) | o (both dirs)
        g = jnp.tanh(g_all[:, four_h:])                  # g (both dirs)
        return sig[:, two_h:] * jnp.tanh(sig[:, :two_h] * g)   # o*tanh(i*g) = [h_f|h_b]

    h = gates_to_h(gates)
    for l in range(n_rest):                              # inter-layer dropout = identity (eval)
        h = gates_to_h(
            jnp.dot(h, wr_ref[l], preferred_element_type=jnp.float32) + br_ref[l])

    # --- folded BatchNorm1d (eval) + ReLU + transposed Linear head ---
    y = jnp.maximum(h * bn_a_ref[...] + bn_b_ref[...], 0.0)          # (Bb, 2*H_pad)
    # Output is produced transposed, (out_rows, Bb): batch on lanes -> lane-dense store
    # without a 128-lane-padded f32 slab per batch row.  y.T is one cheap XLU transpose.
    out = jnp.dot(ow_ref[...], y.T, preferred_element_type=jnp.float32)
    out_ref[...] = out + ob_ref[...]


# ----------------------------------------------------------------------------- wrapper
def lstm_custom_forward(packed, x_cat, x_num, *, block_b=512):
    B, L = x_cat.shape
    F = x_num.shape[1]
    F_pad = packed['num_w0'].shape[0]
    V_pad, six_h = packed['emb_w0'].shape
    two_h = six_h // 3
    out_rows = packed['ow_t'].shape[0]
    dim_out = packed['dim_out']
    n_rest = packed['n_rest']

    # Batch padding / tiling.  Per-grid-step overhead dominates at these model sizes,
    # so run a SINGLE step whenever the whole (padded) batch fits one block; only very
    # large batches get tiled (128-aligned blocks -> lane-dense transposed output, and
    # a multi-step "parallel" axis so v7x's second TensorCore gets work).
    B_pad = _round_up(max(B, 1), 8)
    if B_pad > block_b:
        bb = _round_up(block_b, 128)
        B_pad = _round_up(B, bb)
    else:
        bb = B_pad
    grid = (B_pad // bb,)

    x_cat = jnp.pad(x_cat.astype(jnp.int32), ((0, B_pad - B), (0, 0)))
    x_num = jnp.pad(x_num.astype(jnp.float32), ((0, B_pad - B), (0, F_pad - F)))

    weights = (packed['emb_w0'], packed['num_w0'], packed['b0'],
               packed['wr'], packed['br'],
               packed['bn_a'], packed['bn_b'],
               packed['ow_t'], packed['ob_t'])

    def const_spec(arr):
        if arr.ndim == 3:
            return pl.BlockSpec(arr.shape, lambda i: (0, 0, 0))
        return pl.BlockSpec(arr.shape, lambda i: (0, 0))

    in_specs = [pl.BlockSpec((bb, L), lambda i: (i, 0)),
                pl.BlockSpec((bb, F_pad), lambda i: (i, 0))]
    in_specs += [const_spec(w) for w in weights]

    # Advisory cost estimate for the XLA scheduler.
    flops = 2 * B_pad * (V_pad * six_h + F_pad * six_h
                         + n_rest * two_h * six_h + two_h * out_rows)
    transcendentals = B_pad * (n_rest + 1) * 4 * two_h
    bytes_accessed = (sum(int(a.size) * a.dtype.itemsize for a in (x_cat, x_num) + weights)
                      + out_rows * B_pad * 4)

    kernel = functools.partial(_lstm_custom_kernel, n_rest=n_rest)

    out = pl.pallas_call(
        kernel,
        out_shape=jax.ShapeDtypeStruct((out_rows, B_pad), jnp.float32),
        grid=grid,
        in_specs=in_specs,
        out_specs=pl.BlockSpec((out_rows, bb), lambda i: (0, i)),
        compiler_params=pltpu.CompilerParams(
            dimension_semantics=("parallel",),
            vmem_limit_bytes=32 * 1024 * 1024),
        cost_estimate=pl.CostEstimate(flops=int(flops),
                                      transcendentals=int(transcendentals),
                                      bytes_accessed=int(bytes_accessed)),
    )(x_cat, x_num, *weights)

    if dim_out == 1:                                     # torch: x.squeeze(-1)
        return out[0, :B]
    return out[:dim_out, :B].T


# ----------------------------------------------------------------------------- params
def init_params(key, *, cat_features, num_features, size_embedding, hidden_size,
                num_layers, dim_out):
    """Raw parameters in PyTorch layouts (fresh init, eval mode)."""
    V = cat_features + 1
    E = size_embedding
    H = hidden_size
    F = num_features

    keys = jax.random.split(key, 3 + num_layers * 8 + 1)
    u = lambda k, shape, s: jax.random.uniform(k, shape, jnp.float32, -s, s)

    emb = jax.random.normal(keys[0], (V, E), jnp.float32)
    emb = emb.at[0].set(0.0)                             # padding_idx row is zero
    num_w = u(keys[1], (F, E), 1.0 / (E ** 0.5))
    num_b = u(keys[2], (F, E), 1.0 / (E ** 0.5))

    s = 1.0 / (H ** 0.5)
    w_ih, w_hh, b_ih, b_hh = [], [], [], []
    kidx = 3
    for l in range(num_layers):
        in_l = 2 * E if l == 0 else 2 * H
        lw_ih, lw_hh, lb_ih, lb_hh = [], [], [], []
        for _d in range(2):                              # forward, backward
            k0, k1, k2, k3 = keys[kidx:kidx + 4]
            kidx += 4
            lw_ih.append(u(k0, (4 * H, in_l), s))        # PyTorch gate order [i, f, g, o]
            lw_hh.append(u(k1, (4 * H, H), s))           # dead (h0 == 0), kept for reference
            lb_ih.append(u(k2, (4 * H,), s))
            lb_hh.append(u(k3, (4 * H,), s))
        w_ih.append(tuple(lw_ih)); w_hh.append(tuple(lw_hh))
        b_ih.append(tuple(lb_ih)); b_hh.append(tuple(lb_hh))

    bn_gamma = jnp.ones((2 * H,), jnp.float32)
    bn_beta = jnp.zeros((2 * H,), jnp.float32)
    bn_mean = jnp.zeros((2 * H,), jnp.float32)           # fresh-init running stats
    bn_var = jnp.ones((2 * H,), jnp.float32)

    so = 1.0 / ((2 * H) ** 0.5)
    out_w = u(keys[-1], (dim_out, 2 * H), so)
    out_b = jnp.zeros((dim_out,), jnp.float32)

    return dict(emb=emb, num_w=num_w, num_b=num_b,
                w_ih=w_ih, w_hh=w_hh, b_ih=b_ih, b_hh=b_hh,
                bn_gamma=bn_gamma, bn_beta=bn_beta, bn_mean=bn_mean, bn_var=bn_var,
                out_w=out_w, out_b=out_b,
                hidden_size=H, num_layers=num_layers)


def pack_params(raw, *, v_lane_pad=128):
    """Fold raw (PyTorch-layout) params into the kernel's lane-aligned packed layout."""
    H = raw['hidden_size']
    num_layers = raw['num_layers']
    H_pad = _round_up(H, 64)            # 2*H_pad % 128 == 0 -> all gate slices lane-aligned
    two_h = 2 * H_pad
    six_h = 3 * two_h

    emb = raw['emb'].astype(jnp.float32)
    V, E = emb.shape
    # The kernel drops the `idx != 0` mask in the bag build: padding hits must land on a
    # zero row of the folded table (guaranteed by PyTorch's padding_idx). Assert it.
    assert bool(jnp.all(emb[0] == 0.0)), "EmbeddingBag padding_idx row must be exactly zero"
    V_pad = _round_up(V, v_lane_pad)

    num_w = raw['num_w'].astype(jnp.float32)
    F = num_w.shape[0]
    F_pad = _round_up(max(F, 1), 8)

    gate_order = (0, 3, 2)              # PyTorch [i, f, g, o] -> keep [i, o, g]; f is dead

    def pack_w(w_dirs, row_map, in_pad):
        # w_dirs: (w_fwd, w_bwd), each (4H, in_raw).  Returns (in_pad, six_h) with lane
        # layout [i_f | i_b | o_f | o_b | g_f | g_b]; row_map = [(dst, src, n), ...]
        # places raw input rows into the (padded) input dimension.
        out = jnp.zeros((in_pad, six_h), jnp.float32)
        for gi, g in enumerate(gate_order):
            for d, w in enumerate(w_dirs):
                col0 = (2 * gi + d) * H_pad
                blk = w[g * H:(g + 1) * H, :].T          # (in_raw, H)
                for dst, src, n in row_map:
                    out = out.at[dst:dst + n, col0:col0 + H].set(blk[src:src + n, :])
        return out

    def pack_b(b_dirs):
        out = jnp.zeros((1, six_h), jnp.float32)
        for gi, g in enumerate(gate_order):
            for d, b in enumerate(b_dirs):
                col0 = (2 * gi + d) * H_pad
                out = out.at[0, col0:col0 + H].set(b[g * H:(g + 1) * H])
        return out

    # --- layer 0: fold the embedding tables straight into the gate matmuls ---
    w0f, w0b = raw['w_ih'][0]
    W0_cat = pack_w((w0f, w0b), [(0, 0, E)], E)          # consumes cat_embed
    W0_num = pack_w((w0f, w0b), [(0, E, E)], E)          # consumes num_embed
    emb_w0 = jnp.zeros((V_pad, six_h), jnp.float32).at[:V].set(emb @ W0_cat)
    num_w0 = jnp.zeros((F_pad, six_h), jnp.float32).at[:F].set((num_w @ W0_num) * (1.0 / F))
    # TODO(synk): NumericalEmbedding is not defined in the reference file; modeled as a
    # per-feature affine embedding x[:, f] * W[f, :] + b[f, :], then mean over features.
    b0 = (pack_b((raw['b_ih'][0][0] + raw['b_hh'][0][0],
                  raw['b_ih'][0][1] + raw['b_hh'][0][1]))
          + (jnp.sum(raw['num_b'], axis=0, keepdims=True) @ W0_num) * (1.0 / F))

    # --- layers 1..L-1: input is [h_f | h_b] at lanes [0:H] and [H_pad:H_pad+H] ---
    row_map_h = [(0, 0, H), (H_pad, H, H)]
    wr, br = [], []
    for l in range(1, num_layers):
        wr.append(pack_w(raw['w_ih'][l], row_map_h, two_h))
        br.append(pack_b((raw['b_ih'][l][0] + raw['b_hh'][l][0],
                          raw['b_ih'][l][1] + raw['b_hh'][l][1])))
    n_rest = num_layers - 1
    if n_rest:
        wr = jnp.stack(wr)                               # (n_rest, 2*H_pad, 6*H_pad)
        br = jnp.stack(br)                               # (n_rest, 1, 6*H_pad)
    else:
        wr = jnp.zeros((1, two_h, six_h), jnp.float32)   # unused dummy (kernel skips it)
        br = jnp.zeros((1, 1, six_h), jnp.float32)

    # --- BatchNorm1d eval fold onto the padded hidden layout:  y = h * a + b2 ---
    eps = 1e-5
    a = raw['bn_gamma'] * jax.lax.rsqrt(raw['bn_var'] + eps)
    shift = raw['bn_beta'] - raw['bn_mean'] * a

    def to_padded_hidden(v):
        return (jnp.zeros((1, two_h), jnp.float32)
                .at[0, 0:H].set(v[0:H])
                .at[0, H_pad:H_pad + H].set(v[H:2 * H]))

    bn_a = to_padded_hidden(a)
    bn_b = to_padded_hidden(shift)

    # --- Linear head, transposed (batch on lanes), rows padded to a sublane multiple ---
    out_w = raw['out_w']
    dim_out = out_w.shape[0]
    out_rows = _round_up(max(dim_out, 1), 8)
    ow_t = jnp.zeros((out_rows, two_h), jnp.float32)
    ow_t = ow_t.at[:dim_out, 0:H].set(out_w[:, 0:H])
    ow_t = ow_t.at[:dim_out, H_pad:H_pad + H].set(out_w[:, H:2 * H])
    ob_t = jnp.zeros((out_rows, 1), jnp.float32).at[:dim_out, 0].set(raw['out_b'])

    return dict(emb_w0=emb_w0, num_w0=num_w0, b0=b0, wr=wr, br=br,
                bn_a=bn_a, bn_b=bn_b, ow_t=ow_t, ob_t=ob_t,
                dim_out=dim_out, n_rest=n_rest)


# ----------------------------------------------------------------------------- reference
def reference_forward(raw, x_cat, x_num):
    """Pure-JAX mirror of the PyTorch forward (eval mode) using the RAW params and the
    full LSTM cell (incl. forget gate and W_hh with h0 = c0 = 0), f32 highest precision."""
    P = jax.lax.Precision.HIGHEST
    dot = lambda a, b: jnp.dot(a, b, precision=P, preferred_element_type=jnp.float32)

    # EmbeddingBag(mode='mean', padding_idx=0)
    valid = (x_cat != 0).astype(jnp.float32)
    onehot = jax.nn.one_hot(x_cat, raw['emb'].shape[0], dtype=jnp.float32) * valid[..., None]
    bag = onehot.sum(axis=1)
    counts = valid.sum(axis=1, keepdims=True)
    cat_embed = dot(bag, raw['emb']) / jnp.maximum(counts, 1.0)

    # NumericalEmbedding(...).mean(dim=1)  (same affine model as the kernel fold)
    F = x_num.shape[1]
    num_embed = (dot(x_num, raw['num_w']) + raw['num_b'].sum(axis=0)) * (1.0 / F)

    x = jnp.concatenate([cat_embed, num_embed], axis=1)
    H = raw['hidden_size']

    def cell(xin, h0, c0, w_ih, w_hh, bi, bh):
        g = dot(xin, w_ih.T) + dot(h0, w_hh.T) + (bi + bh)
        i, f, gg, o = [g[:, k * H:(k + 1) * H] for k in range(4)]
        c = jax.nn.sigmoid(f) * c0 + jax.nn.sigmoid(i) * jnp.tanh(gg)
        return jax.nn.sigmoid(o) * jnp.tanh(c)

    B = x.shape[0]
    h = x
    z = jnp.zeros((B, H), jnp.float32)
    for l in range(raw['num_layers']):
        h_f = cell(h, z, z, raw['w_ih'][l][0], raw['w_hh'][l][0],
                   raw['b_ih'][l][0], raw['b_hh'][l][0])
        h_b = cell(h, z, z, raw['w_ih'][l][1], raw['w_hh'][l][1],
                   raw['b_ih'][l][1], raw['b_hh'][l][1])
        h = jnp.concatenate([h_f, h_b], axis=1)          # dropout identity in eval

    a = raw['bn_gamma'] * jax.lax.rsqrt(raw['bn_var'] + 1e-5)
    y = (h - raw['bn_mean']) * a + raw['bn_beta']
    y = jnp.maximum(y, 0.0)
    out = dot(y, raw['out_w'].T) + raw['out_b']
    return out[:, 0] if raw['out_w'].shape[0] == 1 else out


# ----------------------------------------------------------------------------- main
if __name__ == "__main__":
    # Small shapes consistent with the module's forward.
    B, L, cat_features, num_features = 4, 6, 16, 3
    E, H, num_layers, dim_out = 32, 32, 3, 1

    key = jax.random.PRNGKey(0)
    kp, kc, kn = jax.random.split(key, 3)
    raw = init_params(kp, cat_features=cat_features, num_features=num_features,
                      size_embedding=E, hidden_size=H, num_layers=num_layers,
                      dim_out=dim_out)
    packed = pack_params(raw)

    x_cat = jax.random.randint(kc, (B, L), 0, cat_features + 1, dtype=jnp.int32)
    x_num = jax.random.normal(kn, (B, num_features), dtype=jnp.float32)

    # Small batch: single grid step (no tiling).
    out = jax.block_until_ready(lstm_custom_forward(packed, x_cat, x_num))
    ref = reference_forward(raw, x_cat, x_num)
    assert out.shape == (B,), out.shape
    assert jnp.allclose(out, ref, atol=1e-2, rtol=1e-2), (out, ref)

    # Larger batch: exercises the tiled multi-step ("parallel" / megacore) path.
    B2 = 300
    kc2, kn2 = jax.random.split(jax.random.PRNGKey(1))
    x_cat2 = jax.random.randint(kc2, (B2, L), 0, cat_features + 1, dtype=jnp.int32)
    x_num2 = jax.random.normal(kn2, (B2, num_features), dtype=jnp.float32)
    out2 = jax.block_until_ready(lstm_custom_forward(packed, x_cat2, x_num2, block_b=128))
    ref2 = reference_forward(raw, x_cat2, x_num2)
    assert out2.shape == (B2,), out2.shape
    assert jnp.allclose(out2, ref2, atol=1e-2, rtol=1e-2)

    print("KERNEL_OK")
</pallas_src>

<mosaic_0001>
module attributes {stable_mosaic.version = 11 : i64} {
  func.func @_lstm_custom_kernel(%arg0: i32, %arg1: memref<8x6xi32, #tpu.memory_space<vmem>>, %arg2: memref<8x8xf32, #tpu.memory_space<vmem>>, %arg3: memref<128x384xf32, #tpu.memory_space<vmem>>, %arg4: memref<8x384xf32, #tpu.memory_space<vmem>>, %arg5: memref<1x384xf32, #tpu.memory_space<vmem>>, %arg6: memref<2x128x384xf32, #tpu.memory_space<vmem>>, %arg7: memref<2x1x384xf32, #tpu.memory_space<vmem>>, %arg8: memref<1x128xf32, #tpu.memory_space<vmem>>, %arg9: memref<1x128xf32, #tpu.memory_space<vmem>>, %arg10: memref<8x128xf32, #tpu.memory_space<vmem>>, %arg11: memref<8x1xf32, #tpu.memory_space<vmem>>, %arg12: memref<8x8xf32, #tpu.memory_space<vmem>>) attributes {dimension_semantics = [#tpu.dimension_semantics<parallel>], iteration_bounds = array<i64: 1>, scalar_prefetch = 0 : i64, scratch_operands = 0 : i64, tpu.core_type = #tpu.core_type<tc>, window_params = [{transform_indices = @transform_0, window_bounds = array<i64: 8, 6>}, {transform_indices = @transform_1, window_bounds = array<i64: 8, 8>}, {pipeline_mode = #tpu.pipeline_mode<synchronous>, transform_indices = @transform_2, window_bounds = array<i64: 128, 384>}, {pipeline_mode = #tpu.pipeline_mode<synchronous>, transform_indices = @transform_3, window_bounds = array<i64: 8, 384>}, {pipeline_mode = #tpu.pipeline_mode<synchronous>, transform_indices = @transform_4, window_bounds = array<i64: 1, 384>}, {pipeline_mode = #tpu.pipeline_mode<synchronous>, transform_indices = @transform_5, window_bounds = array<i64: 2, 128, 384>}, {pipeline_mode = #tpu.pipeline_mode<synchronous>, transform_indices = @transform_6, window_bounds = array<i64: 2, 1, 384>}, {pipeline_mode = #tpu.pipeline_mode<synchronous>, transform_indices = @transform_7, window_bounds = array<i64: 1, 128>}, {pipeline_mode = #tpu.pipeline_mode<synchronous>, transform_indices = @transform_8, window_bounds = array<i64: 1, 128>}, {pipeline_mode = #tpu.pipeline_mode<synchronous>, transform_indices = @transform_9, window_bounds = array<i64: 8, 128>}, {pipeline_mode = #tpu.pipeline_mode<synchronous>, transform_indices = @transform_10, window_bounds = array<i64: 8, 1>}, {transform_indices = @transform_11, window_bounds = array<i64: 8, 8>}]} {
    %c0 = arith.constant 0 : index
    %c0_0 = arith.constant 0 : index
    %0 = vector.load %arg1[%c0, %c0_0] : memref<8x6xi32, #tpu.memory_space<vmem>>, vector<8x6xi32>
    %1 = tpu.iota {dimensions = array<i32: 1>} : vector<8x128xi32>
    %c0_i32 = arith.constant 0 : i32
    %2 = vector.broadcast %c0_i32 : i32 to vector<8x128xi32>
    %3 = vector.extract_strided_slice %0 {offsets = [0, 0], sizes = [8, 1], strides = [1, 1]} : vector<8x6xi32> to vector<8x1xi32>
    %4 = vector.broadcast %3 : vector<8x1xi32> to vector<8x128xi32>
    %5 = arith.cmpi eq, %1, %4 : vector<8x128xi32>
    %6 = arith.extui %5 : vector<8x128xi1> to vector<8x128xi32>
    %7 = arith.addi %2, %6 : vector<8x128xi32>
    %8 = vector.extract_strided_slice %0 {offsets = [0, 1], sizes = [8, 1], strides = [1, 1]} : vector<8x6xi32> to vector<8x1xi32>
    %9 = vector.broadcast %8 : vector<8x1xi32> to vector<8x128xi32>
    %10 = arith.cmpi eq, %1, %9 : vector<8x128xi32>
    %11 = arith.extui %10 : vector<8x128xi1> to vector<8x128xi32>
    %12 = arith.addi %7, %11 : vector<8x128xi32>
    %13 = vector.extract_strided_slice %0 {offsets = [0, 2], sizes = [8, 1], strides = [1, 1]} : vector<8x6xi32> to vector<8x1xi32>
    %14 = vector.broadcast %13 : vector<8x1xi32> to vector<8x128xi32>
    %15 = arith.cmpi eq, %1, %14 : vector<8x128xi32>
    %16 = arith.extui %15 : vector<8x128xi1> to vector<8x128xi32>
    %17 = arith.addi %12, %16 : vector<8x128xi32>
    %18 = vector.extract_strided_slice %0 {offsets = [0, 3], sizes = [8, 1], strides = [1, 1]} : vector<8x6xi32> to vector<8x1xi32>
    %19 = vector.broadcast %18 : vector<8x1xi32> to vector<8x128xi32>
    %20 = arith.cmpi eq, %1, %19 : vector<8x128xi32>
    %21 = arith.extui %20 : vector<8x128xi1> to vector<8x128xi32>
    %22 = arith.addi %17, %21 : vector<8x128xi32>
    %23 = vector.extract_strided_slice %0 {offsets = [0, 4], sizes = [8, 1], strides = [1, 1]} : vector<8x6xi32> to vector<8x1xi32>
    %24 = vector.broadcast %23 : vector<8x1xi32> to vector<8x128xi32>
    %25 = arith.cmpi eq, %1, %24 : vector<8x128xi32>
    %26 = arith.extui %25 : vector<8x128xi1> to vector<8x128xi32>
    %27 = arith.addi %22, %26 : vector<8x128xi32>
    %28 = vector.extract_strided_slice %0 {offsets = [0, 5], sizes = [8, 1], strides = [1, 1]} : vector<8x6xi32> to vector<8x1xi32>
    %29 = vector.broadcast %28 : vector<8x1xi32> to vector<8x128xi32>
    %30 = arith.cmpi eq, %1, %29 : vector<8x128xi32>
    %31 = arith.extui %30 : vector<8x128xi1> to vector<8x128xi32>
    %32 = arith.addi %27, %31 : vector<8x128xi32>
    %33 = vector.extract_strided_slice %32 {offsets = [0, 0], sizes = [8, 1], strides = [1, 1]} : vector<8x128xi32> to vector<8x1xi32>
    %c6_i32 = arith.constant 6 : i32
    %34 = vector.broadcast %c6_i32 : i32 to vector<8x1xi32>
    %35 = arith.subi %34, %33 : vector<8x1xi32>
    %36 = arith.sitofp %35 : vector<8x1xi32> to vector<8x1xf32>
    %37 = arith.sitofp %32 : vector<8x128xi32> to vector<8x128xf32>
    %cst = arith.constant 1.000000e+00 : f32
    %38 = vector.broadcast %cst : f32 to vector<8x1xf32>
    %39 = arith.maximumf %36, %38 : vector<8x1xf32>
    %cst_1 = arith.constant 1.000000e+00 : f32
    %40 = vector.broadcast %cst_1 : f32 to vector<8x1xf32>
    %41 = arith.divf %40, %39 : vector<8x1xf32>
    %42 = vector.broadcast %41 : vector<8x1xf32> to vector<8x128xf32>
    %43 = arith.mulf %37, %42 : vector<8x128xf32>
    %c0_2 = arith.constant 0 : index
    %c0_3 = arith.constant 0 : index
    %44 = vector.load %arg3[%c0_2, %c0_3] : memref<128x384xf32, #tpu.memory_space<vmem>>, vector<128x384xf32>
    %cst_4 = arith.constant dense<0.000000e+00> : vector<8x384xf32>
    %45 = tpu.matmul %43, %44, %cst_4 {dimension_numbers = #tpu.dot_dimension_numbers<[1], [0], [0], [1], [0, 0, 1, 1], [], []>} : vector<8x128xf32>, vector<128x384xf32>, vector<8x384xf32> -> vector<8x384xf32>
    %c0_5 = arith.constant 0 : index
    %c0_6 = arith.constant 0 : index
    %46 = vector.load %arg2[%c0_5, %c0_6] : memref<8x8xf32, #tpu.memory_space<vmem>>, vector<8x8xf32>
    %c0_7 = arith.constant 0 : index
    %c0_8 = arith.constant 0 : index
    %47 = vector.load %arg4[%c0_7, %c0_8] : memref<8x384xf32, #tpu.memory_space<vmem>>, vector<8x384xf32>
    %cst_9 = arith.constant dense<0.000000e+00> : vector<8x384xf32>
    %48 = tpu.matmul %46, %47, %cst_9 {dimension_numbers = #tpu.dot_dimension_numbers<[1], [0], [0], [1], [0, 0, 1, 1], [], []>} : vector<8x8xf32>, vector<8x384xf32>, vector<8x384xf32> -> vector<8x384xf32>
    %49 = arith.addf %45, %48 : vector<8x384xf32>
    %c0_10 = arith.constant 0 : index
    %c0_11 = arith.constant 0 : index
    %50 = vector.load %arg5[%c0_10, %c0_11] : memref<1x384xf32, #tpu.memory_space<vmem>>, vector<1x384xf32>
    %51 = vector.broadcast %50 : vector<1x384xf32> to vector<8x384xf32>
    %52 = arith.addf %49, %51 : vector<8x384xf32>
    %53 = vector.extract_strided_slice %52 {offsets = [0, 0], sizes = [8, 256], strides = [1, 1]} : vector<8x384xf32> to vector<8x256xf32>
    %54 = arith.negf %53 : vector<8x256xf32>
    %55 = math.exp %54 : vector<8x256xf32>
    %cst_12 = arith.constant 1.000000e+00 : f32
    %56 = vector.broadcast %cst_12 : f32 to vector<8x256xf32>
    %57 = arith.addf %56, %55 : vector<8x256xf32>
    %58 = arith.divf %56, %57 : vector<8x256xf32>
    %59 = vector.extract_strided_slice %52 {offsets = [0, 256], sizes = [8, 128], strides = [1, 1]} : vector<8x384xf32> to vector<8x128xf32>
    %60 = math.tanh %59 : vector<8x128xf32>
    %61 = vector.extract_strided_slice %58 {offsets = [0, 128], sizes = [8, 128], strides = [1, 1]} : vector<8x256xf32> to vector<8x128xf32>
    %62 = vector.extract_strided_slice %58 {offsets = [0, 0], sizes = [8, 128], strides = [1, 1]} : vector<8x256xf32> to vector<8x128xf32>
    %63 = arith.mulf %62, %60 : vector<8x128xf32>
    %64 = math.tanh %63 : vector<8x128xf32>
    %65 = arith.mulf %61, %64 : vector<8x128xf32>
    %c0_13 = arith.constant 0 : index
    %c0_14 = arith.constant 0 : index
    %c0_15 = arith.constant 0 : index
    %66 = vector.load %arg6[%c0_13, %c0_14, %c0_15] : memref<2x128x384xf32, #tpu.memory_space<vmem>>, vector<1x128x384xf32>
    %67 = vector.shape_cast %66 : vector<1x128x384xf32> to vector<128x384xf32>
    %cst_16 = arith.constant dense<0.000000e+00> : vector<8x384xf32>
    %68 = tpu.matmul %65, %67, %cst_16 {dimension_numbers = #tpu.dot_dimension_numbers<[1], [0], [0], [1], [0, 0, 1, 1], [], []>} : vector<8x128xf32>, vector<128x384xf32>, vector<8x384xf32> -> vector<8x384xf32>
    %c0_17 = arith.constant 0 : index
    %c0_18 = arith.constant 0 : index
    %c0_19 = arith.constant 0 : index
    %69 = vector.load %arg7[%c0_17, %c0_18, %c0_19] : memref<2x1x384xf32, #tpu.memory_space<vmem>>, vector<1x1x384xf32>
    %70 = vector.shape_cast %69 : vector<1x1x384xf32> to vector<1x384xf32>
    %71 = vector.broadcast %70 : vector<1x384xf32> to vector<8x384xf32>
    %72 = arith.addf %68, %71 : vector<8x384xf32>
    %73 = vector.extract_strided_slice %72 {offsets = [0, 0], sizes = [8, 256], strides = [1, 1]} : vector<8x384xf32> to vector<8x256xf32>
    %74 = arith.negf %73 : vector<8x256xf32>
    %75 = math.exp %74 : vector<8x256xf32>
    %cst_20 = arith.constant 1.000000e+00 : f32
    %76 = vector.broadcast %cst_20 : f32 to vector<8x256xf32>
    %77 = arith.addf %76, %75 : vector<8x256xf32>
    %78 = arith.divf %76, %77 : vector<8x256xf32>
    %79 = vector.extract_strided_slice %72 {offsets = [0, 256], sizes = [8, 128], strides = [1, 1]} : vector<8x384xf32> to vector<8x128xf32>
    %80 = math.tanh %79 : vector<8x128xf32>
    %81 = vector.extract_strided_slice %78 {offsets = [0, 128], sizes = [8, 128], strides = [1, 1]} : vector<8x256xf32> to vector<8x128xf32>
    %82 = vector.extract_strided_slice %78 {offsets = [0, 0], sizes = [8, 128], strides = [1, 1]} : vector<8x256xf32> to vector<8x128xf32>
    %83 = arith.mulf %82, %80 : vector<8x128xf32>
    %84 = math.tanh %83 : vector<8x128xf32>
    %85 = arith.mulf %81, %84 : vector<8x128xf32>
    %c1 = arith.constant 1 : index
    %c0_21 = arith.constant 0 : index
    %c0_22 = arith.constant 0 : index
    %86 = vector.load %arg6[%c1, %c0_21, %c0_22] : memref<2x128x384xf32, #tpu.memory_space<vmem>>, vector<1x128x384xf32>
    %87 = vector.shape_cast %86 : vector<1x128x384xf32> to vector<128x384xf32>
    %cst_23 = arith.constant dense<0.000000e+00> : vector<8x384xf32>
    %88 = tpu.matmul %85, %87, %cst_23 {dimension_numbers = #tpu.dot_dimension_numbers<[1], [0], [0], [1], [0, 0, 1, 1], [], []>} : vector<8x128xf32>, vector<128x384xf32>, vector<8x384xf32> -> vector<8x384xf32>
    %c1_24 = arith.constant 1 : index
    %c0_25 = arith.constant 0 : index
    %c0_26 = arith.constant 0 : index
    %89 = vector.load %arg7[%c1_24, %c0_25, %c0_26] : memref<2x1x384xf32, #tpu.memory_space<vmem>>, vector<1x1x384xf32>
    %90 = vector.shape_cast %89 : vector<1x1x384xf32> to vector<1x384xf32>
    %91 = vector.broadcast %90 : vector<1x384xf32> to vector<8x384xf32>
    %92 = arith.addf %88, %91 : vector<8x384xf32>
    %93 = vector.extract_strided_slice %92 {offsets = [0, 0], sizes = [8, 256], strides = [1, 1]} : vector<8x384xf32> to vector<8x256xf32>
    %94 = arith.negf %93 : vector<8x256xf32>
    %95 = math.exp %94 : vector<8x256xf32>
    %cst_27 = arith.constant 1.000000e+00 : f32
    %96 = vector.broadcast %cst_27 : f32 to vector<8x256xf32>
    %97 = arith.addf %96, %95 : vector<8x256xf32>
    %98 = arith.divf %96, %97 : vector<8x256xf32>
    %99 = vector.extract_strided_slice %92 {offsets = [0, 256], sizes = [8, 128], strides = [1, 1]} : vector<8x384xf32> to vector<8x128xf32>
    %100 = math.tanh %99 : vector<8x128xf32>
    %101 = vector.extract_strided_slice %98 {offsets = [0, 128], sizes = [8, 128], strides = [1, 1]} : vector<8x256xf32> to vector<8x128xf32>
    %102 = vector.extract_strided_slice %98 {offsets = [0, 0], sizes = [8, 128], strides = [1, 1]} : vector<8x256xf32> to vector<8x128xf32>
    %103 = arith.mulf %102, %100 : vector<8x128xf32>
    %104 = math.tanh %103 : vector<8x128xf32>
    %105 = arith.mulf %101, %104 : vector<8x128xf32>
    %c0_28 = arith.constant 0 : index
    %c0_29 = arith.constant 0 : index
    %106 = vector.load %arg8[%c0_28, %c0_29] : memref<1x128xf32, #tpu.memory_space<vmem>>, vector<1x128xf32>
    %107 = vector.broadcast %106 : vector<1x128xf32> to vector<8x128xf32>
    %108 = arith.mulf %105, %107 : vector<8x128xf32>
    %c0_30 = arith.constant 0 : index
    %c0_31 = arith.constant 0 : index
    %109 = vector.load %arg9[%c0_30, %c0_31] : memref<1x128xf32, #tpu.memory_space<vmem>>, vector<1x128xf32>
    %110 = vector.broadcast %109 : vector<1x128xf32> to vector<8x128xf32>
    %111 = arith.addf %108, %110 : vector<8x128xf32>
    %cst_32 = arith.constant 0.000000e+00 : f32
    %112 = vector.broadcast %cst_32 : f32 to vector<8x128xf32>
    %113 = arith.maximumf %111, %112 : vector<8x128xf32>
    %c0_33 = arith.constant 0 : index
    %c0_34 = arith.constant 0 : index
    %114 = vector.load %arg10[%c0_33, %c0_34] : memref<8x128xf32, #tpu.memory_space<vmem>>, vector<8x128xf32>
    %115 = tpu.transpose %113, [1, 0] : vector<8x128xf32> -> vector<128x8xf32>
    %cst_35 = arith.constant dense<0.000000e+00> : vector<8x8xf32>
    %116 = tpu.matmul %114, %115, %cst_35 {dimension_numbers = #tpu.dot_dimension_numbers<[1], [0], [0], [1], [0, 0, 1, 1], [], []>} : vector<8x128xf32>, vector<128x8xf32>, vector<8x8xf32> -> vector<8x8xf32>
    %c0_36 = arith.constant 0 : index
    %c0_37 = arith.constant 0 : index
    %117 = vector.load %arg11[%c0_36, %c0_37] : memref<8x1xf32, #tpu.memory_space<vmem>>, vector<8x1xf32>
    %118 = vector.broadcast %117 : vector<8x1xf32> to vector<8x8xf32>
    %119 = arith.addf %116, %118 : vector<8x8xf32>
    %c0_38 = arith.constant 0 : index
    %c0_39 = arith.constant 0 : index
    %120 = vector.load %arg12[%c0_38, %c0_39] : memref<8x8xf32, #tpu.memory_space<vmem>>, vector<8x8xf32>
    tpu.vector_store %arg12[%c0_38, %c0_39], %119 {strides = array<i32>} : memref<8x8xf32, #tpu.memory_space<vmem>>, vector<8x8xf32>,
    return
  }
  func.func @transform_0(%arg0: i32) -> (i32, i32) {
    %c0_i32 = arith.constant 0 : i32
    %c0_i32_0 = arith.constant 0 : i32
    return %arg0, %c0_i32 : i32, i32
  }
  func.func @transform_1(%arg0: i32) -> (i32, i32) {
    %c0_i32 = arith.constant 0 : i32
    %c0_i32_0 = arith.constant 0 : i32
    return %arg0, %c0_i32 : i32, i32
  }
  func.func @transform_2(%arg0: i32) -> (i32, i32) {
    %c0_i32 = arith.constant 0 : i32
    %c0_i32_0 = arith.constant 0 : i32
    %c0_i32_1 = arith.constant 0 : i32
    return %c0_i32, %c0_i32_0 : i32, i32
  }
  func.func @transform_3(%arg0: i32) -> (i32, i32) {
    %c0_i32 = arith.constant 0 : i32
    %c0_i32_0 = arith.constant 0 : i32
    %c0_i32_1 = arith.constant 0 : i32
    return %c0_i32, %c0_i32_0 : i32, i32
  }
  func.func @transform_4(%arg0: i32) -> (i32, i32) {
    %c0_i32 = arith.constant 0 : i32
    %c0_i32_0 = arith.constant 0 : i32
    %c0_i32_1 = arith.constant 0 : i32
    return %c0_i32, %c0_i32_0 : i32, i32
  }
  func.func @transform_5(%arg0: i32) -> (i32, i32, i32) {
    %c0_i32 = arith.constant 0 : i32
    %c0_i32_0 = arith.constant 0 : i32
    %c0_i32_1 = arith.constant 0 : i32
    %c0_i32_2 = arith.constant 0 : i32
    return %c0_i32, %c0_i32_0, %c0_i32_1 : i32, i32, i32
  }
  func.func @transform_6(%arg0: i32) -> (i32, i32, i32) {
    %c0_i32 = arith.constant 0 : i32
    %c0_i32_0 = arith.constant 0 : i32
    %c0_i32_1 = arith.constant 0 : i32
    %c0_i32_2 = arith.constant 0 : i32
    return %c0_i32, %c0_i32_0, %c0_i32_1 : i32, i32, i32
  }
  func.func @transform_7(%arg0: i32) -> (i32, i32) {
    %c0_i32 = arith.constant 0 : i32
    %c0_i32_0 = arith.constant 0 : i32
    %c0_i32_1 = arith.constant 0 : i32
    return %c0_i32, %c0_i32_0 : i32, i32
  }
  func.func @transform_8(%arg0: i32) -> (i32, i32) {
    %c0_i32 = arith.constant 0 : i32
    %c0_i32_0 = arith.constant 0 : i32
    %c0_i32_1 = arith.constant 0 : i32
    return %c0_i32, %c0_i32_0 : i32, i32
  }
  func.func @transform_9(%arg0: i32) -> (i32, i32) {
    %c0_i32 = arith.constant 0 : i32
    %c0_i32_0 = arith.constant 0 : i32
    %c0_i32_1 = arith.constant 0 : i32
    return %c0_i32, %c0_i32_0 : i32, i32
  }
  func.func @transform_10(%arg0: i32) -> (i32, i32) {
    %c0_i32 = arith.constant 0 : i32
    %c0_i32_0 = arith.constant 0 : i32
    %c0_i32_1 = arith.constant 0 : i32
    return %c0_i32, %c0_i32_0 : i32, i32
  }
  func.func @transform_11(%arg0: i32) -> (i32, i32) {
    %c0_i32 = arith.constant 0 : i32
    %c0_i32_0 = arith.constant 0 : i32
    return %c0_i32, %arg0 : i32, i32
  }
}

</mosaic_0001>

<llo_original>
// kernel: tpu_custom_call.1
$region0: #{tpu_custom_call.1}
  #allocation0 [shape = 'u32[]', space=smem, size = 0x4, offset = 0x4, fixed_abs, tag = 'smem constant byte address 0x4 - core index']
  #allocation1 [shape = 'u32[144,128]{1,0:T(1,128)}', space=vmem, size = 0x12000, scoped, tag = 'internal scratch']
  %s0 = inlined_call_operand.vmem [shape: s32[8,6], index: 0, kind: input, shape index: {}]
  %s1 = inlined_call_operand.hbm [shape: f32[8,8], index: 1, kind: input, shape index: {}]
  %s2 = inlined_call_operand.hbm [shape: f32[128,384], index: 2, kind: input, shape index: {}]
  %s3 = inlined_call_operand.hbm [shape: f32[8,384], index: 3, kind: input, shape index: {}]
  %s4 = inlined_call_operand.hbm [shape: f32[1,384], index: 4, kind: input, shape index: {}]
  %s5 = inlined_call_operand.hbm [shape: f32[2,128,384], index: 5, kind: input, shape index: {}]
  %s6 = inlined_call_operand.vmem [shape: f32[2,1,384], index: 6, kind: input, shape index: {}]
  %s7 = inlined_call_operand.vmem [shape: f32[1,128], index: 7, kind: input, shape index: {}]
  %s8 = inlined_call_operand.vmem [shape: f32[1,128], index: 8, kind: input, shape index: {}]
  %s9 = inlined_call_operand.vmem [shape: f32[8,128], index: 9, kind: input, shape index: {}]
  %s10 = inlined_call_operand.vmem [shape: f32[8,1], index: 10, kind: input, shape index: {}]
  %s11 = inlined_call_operand.hbm [shape: f32[8,8], index: 11, kind: output, shape index: {}]
  %s12 = sld [smem:[#allocation0]]
  $region74: #{tpu_custom_call.1} parent=0
    _
  %s14 = ssub.s32 1, %s12
  %s15 = scalar_select 0, %s14, %s12
  $region1: #{tpu_custom_call.1} parent=0
    #allocation2 [shape = 'u8[4096]{0}', space=vmem, size = 0x1000, scoped, tag = 'input window, operand 1, single buffered']
    #allocation3 [shape = 's32[1]{0}', space=sflag, size = 0x4, scoped, tag = 'scoped memory for tpu_custom_call.1']
    #allocation4 [shape = 's32[1]{0}', space=sflag, size = 0x4, scoped, tag = 'scoped memory for tpu_custom_call.1']
    #allocation5 [shape = 'u8[196608]{0}', space=vmem, size = 0x30000, scoped, tag = 'input window, operand 2, single buffered']
    #allocation6 [shape = 's32[1]{0}', space=sflag, size = 0x4, scoped, tag = 'scoped memory for tpu_custom_call.1']
    #allocation7 [shape = 'u8[12288]{0}', space=vmem, size = 0x3000, scoped, tag = 'input window, operand 3, single buffered']
    #allocation8 [shape = 'u8[1536]{0}', space=vmem, size = 0x800, scoped, tag = 'input window, operand 4, single buffered']
    #allocation9 [shape = 's32[1]{0}', space=sflag, size = 0x4, scoped, tag = 'scoped memory for tpu_custom_call.1']
    #allocation10 [shape = 'u8[393216]{0}', space=vmem, size = 0x60000, scoped, tag = 'input window, operand 5, single buffered']
    #allocation11 [shape = 'u8[4096]{0}', space=vmem, size = 0x1000, scoped, tag = 'output window, operand 0, single buffered']
    %16 = vsyncpa [#allocation3], 0
    %17 = vsyncpa [#allocation6], 0
    %18 = vsyncpa [#allocation9], 0
    %19 = vsyncpa [#allocation4], 0
    // Predicated region
    $region2: #{tpu_custom_call.1} parent=1 // pred_check
      _
    $region3: #{tpu_custom_call.1} parent=1 // pred_check_branch
      %21 = sbr.rel (0) target = $region5
    $region4: #{tpu_custom_call.1} parent=1 // pred_region
      _
    $region5: #{tpu_custom_call.1} parent=1 // pred_fallthru
      _
    // Predicated region
    $region6: #{tpu_custom_call.1} parent=1 // pred_check
      _
    $region7: #{tpu_custom_call.1} parent=1 // pred_check_branch
      %23 = sbr.rel (0) target = $region9
    $region8: #{tpu_custom_call.1} parent=1 // pred_region
      %s25 = ssub.s32 128, 128
      %26 = vsyncadd [#allocation3], %s25
      %s28 = sshll.u32 [#allocation2], 4
      %s29 = int_to_ptr.vmem [resolvable:$true] %s28
      %31 = dma.hbm_to_vmem [thread:$0]  %s1, 128, %s29, [#allocation3]
    $region9: #{tpu_custom_call.1} parent=1 // pred_fallthru
      _
    // Predicated region
    $region10: #{tpu_custom_call.1} parent=1 // pred_check
      _
    $region11: #{tpu_custom_call.1} parent=1 // pred_check_branch
      %33 = sbr.rel (0) target = $region13
    $region12: #{tpu_custom_call.1} parent=1 // pred_region
      %s35 = ssub.s32 6144, 6144
      %36 = vsyncadd [#allocation6], %s35
      %s37 = sshll.u32 [#allocation5], 4
      %s38 = int_to_ptr.vmem [resolvable:$true] %s37
      %43 = dma.hbm_to_vmem [thread:$0]  %s2, 6144, %s38, [#allocation6], 384, 384, 24
    $region13: #{tpu_custom_call.1} parent=1 // pred_fallthru
      _
    // Predicated region
    $region14: #{tpu_custom_call.1} parent=1 // pred_check
      _
    $region15: #{tpu_custom_call.1} parent=1 // pred_check_branch
      %45 = sbr.rel (0) target = $region17
    $region16: #{tpu_custom_call.1} parent=1 // pred_region
      %s47 = ssub.s32 384, 384
      %48 = vsyncadd [#allocation6], %s47
      %s50 = sshll.u32 [#allocation7], 4
      %s51 = int_to_ptr.vmem [resolvable:$true] %s50
      %53 = dma.hbm_to_vmem [thread:$0]  %s3, 384, %s51, [#allocation6]
    $region17: #{tpu_custom_call.1} parent=1 // pred_fallthru
      _
    // Predicated region
    $region18: #{tpu_custom_call.1} parent=1 // pred_check
      _
    $region19: #{tpu_custom_call.1} parent=1 // pred_check_branch
      %55 = sbr.rel (0) target = $region21
    $region20: #{tpu_custom_call.1} parent=1 // pred_region
      %s57 = ssub.s32 48, 48
      %58 = vsyncadd [#allocation9], %s57
      %s60 = sshll.u32 [#allocation8], 4
      %s61 = int_to_ptr.vmem [resolvable:$true] %s60
      %63 = dma.hbm_to_vmem [thread:$0]  %s4, 48, %s61, [#allocation9]
    $region21: #{tpu_custom_call.1} parent=1 // pred_fallthru
      _
    // Predicated region
    $region22: #{tpu_custom_call.1} parent=1 // pred_check
      _
    $region23: #{tpu_custom_call.1} parent=1 // pred_check_branch
      %65 = sbr.rel (0) target = $region25
    $region24: #{tpu_custom_call.1} parent=1 // pred_region
      %s67 = ssub.s32 12288, 12288
      %68 = vsyncadd [#allocation9], %s67
      %s69 = sshll.u32 [#allocation10], 4
      %s70 = int_to_ptr.vmem [resolvable:$true] %s69
      %75 = dma.hbm_to_vmem [thread:$0]  %s5, 12288, %s70, [#allocation9], 384, 384, 24
    $region25: #{tpu_custom_call.1} parent=1 // pred_fallthru
      _
    // Predicated region
    $region26: #{tpu_custom_call.1} parent=1 // pred_check
      _
    $region27: #{tpu_custom_call.1} parent=1 // pred_check_branch
      %77 = sbr.rel (0) target = $region29
    $region28: #{tpu_custom_call.1} parent=1 // pred_region
      _
    $region29: #{tpu_custom_call.1} parent=1 // pred_fallthru
      _
    // Predicated region
    $region30: #{tpu_custom_call.1} parent=1 // pred_check
      _
    $region31: #{tpu_custom_call.1} parent=1 // pred_check_branch
      %79 = sbr.rel (0) target = $region33
    $region32: #{tpu_custom_call.1} parent=1 // pred_region
      _
    $region33: #{tpu_custom_call.1} parent=1 // pred_fallthru
      _
    // Predicated region
    $region34: #{tpu_custom_call.1} parent=1 // pred_check
      _
    $region35: #{tpu_custom_call.1} parent=1 // pred_check_branch
      %81 = sbr.rel (0) target = $region37
    $region36: #{tpu_custom_call.1} parent=1 // pred_region
      _
    $region37: #{tpu_custom_call.1} parent=1 // pred_fallthru
      _
    // Predicated region
    $region38: #{tpu_custom_call.1} parent=1 // pred_check
      _
    $region39: #{tpu_custom_call.1} parent=1 // pred_check_branch
      %83 = sbr.rel (0) target = $region41
    $region40: #{tpu_custom_call.1} parent=1 // pred_region
      _
    $region41: #{tpu_custom_call.1} parent=1 // pred_fallthru
      _
    // Predicated region
    $region42: #{tpu_custom_call.1} parent=1 // pred_check
      _
    $region43: #{tpu_custom_call.1} parent=1 // pred_check_branch
      %85 = sbr.rel (0) target = $region45
    $region44: #{tpu_custom_call.1} parent=1 // pred_region
      _
    $region45: #{tpu_custom_call.1} parent=1 // pred_fallthru
      _
    // Predicated region
    $region46: #{tpu_custom_call.1} parent=1 // pred_check
      _
    $region47: #{tpu_custom_call.1} parent=1 // pred_check_branch
      %87 = sbr.rel (0) target = $region49
    $region48: #{tpu_custom_call.1} parent=1 // pred_region
      %88 = dma.done [#allocation3], 128
    $region49: #{tpu_custom_call.1} parent=1 // pred_fallthru
      _
    // Predicated region
    $region50: #{tpu_custom_call.1} parent=1 // pred_check
      _
    $region51: #{tpu_custom_call.1} parent=1 // pred_check_branch
      %90 = sbr.rel (0) target = $region53
    $region52: #{tpu_custom_call.1} parent=1 // pred_region
      %91 = dma.done [#allocation6], 6144
    $region53: #{tpu_custom_call.1} parent=1 // pred_fallthru
      _
    // Predicated region
    $region54: #{tpu_custom_call.1} parent=1 // pred_check
      _
    $region55: #{tpu_custom_call.1} parent=1 // pred_check_branch
      %93 = sbr.rel (0) target = $region57
    $region56: #{tpu_custom_call.1} parent=1 // pred_region
      %94 = dma.done [#allocation6], 384
    $region57: #{tpu_custom_call.1} parent=1 // pred_fallthru
      _
    // Predicated region
    $region58: #{tpu_custom_call.1} parent=1 // pred_check
      _
    $region59: #{tpu_custom_call.1} parent=1 // pred_check_branch
      %96 = sbr.rel (0) target = $region61
    $region60: #{tpu_custom_call.1} parent=1 // pred_region
      %97 = dma.done [#allocation9], 48
    $region61: #{tpu_custom_call.1} parent=1 // pred_fallthru
      _
    // Predicated region
    $region62: #{tpu_custom_call.1} parent=1 // pred_check
      _
    $region63: #{tpu_custom_call.1} parent=1 // pred_check_branch
      %99 = sbr.rel (0) target = $region65
    $region64: #{tpu_custom_call.1} parent=1 // pred_region
      %100 = dma.done [#allocation9], 12288
    $region65: #{tpu_custom_call.1} parent=1 // pred_fallthru
      _
    %v101 = vld [vmem:[%s0] sm:$0xff]
    %v102 = vlaneseq
    %v103 = vand.u32 %v102, 127
    %104 = vset.pattern.permute.xlu0 0
    %105 = vperm.xlu0 %104, %v101
    %v106 = vpop.permute.xlu0 %105
    %vm107 = vcmp.eq.s32.totalorder %v103, %v106
    %v108 = vsel %vm107, 1, 0
    %109 = vset.pattern.permute.xlu0 1
    %110 = vperm.xlu0 %109, %v101
    %v111 = vpop.permute.xlu0 %110
    %vm112 = vcmp.eq.s32.totalorder %v103, %v111
    %v113 = vsel %vm112, 1, 0
    %v114 = vadd.s32 %v108, %v113
    %115 = vset.pattern.permute.xlu0 2
    %116 = vperm.xlu0 %115, %v101
    %v117 = vpop.permute.xlu0 %116
    %vm118 = vcmp.eq.s32.totalorder %v103, %v117
    %v119 = vsel %vm118, 1, 0
    %v120 = vadd.s32 %v114, %v119
    %121 = vset.pattern.permute.xlu0 3
    %122 = vperm.xlu0 %121, %v101
    %v123 = vpop.permute.xlu0 %122
    %vm124 = vcmp.eq.s32.totalorder %v103, %v123
    %v125 = vsel %vm124, 1, 0
    %v126 = vadd.s32 %v120, %v125
    %127 = vset.pattern.permute.xlu0 4
    %128 = vperm.xlu0 %127, %v101
    %v129 = vpop.permute.xlu0 %128
    %vm130 = vcmp.eq.s32.totalorder %v103, %v129
    %v131 = vsel %vm130, 1, 0
    %v132 = vadd.s32 %v126, %v131
    %133 = vset.pattern.permute.xlu0 5
    %134 = vperm.xlu0 %133, %v101
    %v135 = vpop.permute.xlu0 %134
    %vm136 = vcmp.eq.s32.totalorder %v103, %v135
    %v137 = vsel %vm136, 1, 0
    %v138 = vadd.s32 %v132, %v137
    %v139 = vsub.s32 6, %v138
    %v140 = vcvt.s32.f32 %v139
    %v141 = vcvt.s32.f32 %v138
    %v142 = vmax.f32 %v140, 1.0
    %v143 = vrcp.pop %v142
    %v144 = vmul.f32 1.0, %v143
    %146 = vset.pattern.permute.xlu0 0
    %147 = vperm.xlu0 %146, %v144
    %v148 = vpop.permute.xlu0 %147
    %v150 = vmul.f32 %v141, %v148
    %v151 = vld [vmem:[#allocation5] sm:$0xff]
    %v152 = vld [vmem:[#allocation5 + $0x8] sm:$0xff]
    %v153 = vld [vmem:[#allocation5 + $0x10] sm:$0xff]
    %v154 = vld [vmem:[#allocation5 + $0x18] sm:$0xff]
    %v155 = vld [vmem:[#allocation5 + $0x20] sm:$0xff]
    %v156 = vld [vmem:[#allocation5 + $0x28] sm:$0xff]
    %v157 = vld [vmem:[#allocation5 + $0x30] sm:$0xff]
    %v158 = vld [vmem:[#allocation5 + $0x38] sm:$0xff]
    %v159 = vld [vmem:[#allocation5 + $0x40] sm:$0xff]
    %v160 = vld [vmem:[#allocation5 + $0x48] sm:$0xff]
    %v161 = vld [vmem:[#allocation5 + $0x50] sm:$0xff]
    %v162 = vld [vmem:[#allocation5 + $0x58] sm:$0xff]
    %v163 = vld [vmem:[#allocation5 + $0x60] sm:$0xff]
    %v164 = vld [vmem:[#allocation5 + $0x68] sm:$0xff]
    %v165 = vld [vmem:[#allocation5 + $0x70] sm:$0xff]
    %v166 = vld [vmem:[#allocation5 + $0x78] sm:$0xff]
    %v167 = vld [vmem:[#allocation5 + $0x80] sm:$0xff]
    %v168 = vld [vmem:[#allocation5 + $0x88] sm:$0xff]
    %v169 = vld [vmem:[#allocation5 + $0x90] sm:$0xff]
    %v170 = vld [vmem:[#allocation5 + $0x98] sm:$0xff]
    %v171 = vld [vmem:[#allocation5 + $0xa0] sm:$0xff]
    %v172 = vld [vmem:[#allocation5 + $0xa8] sm:$0xff]
    %v173 = vld [vmem:[#allocation5 + $0xb0] sm:$0xff]
    %v174 = vld [vmem:[#allocation5 + $0xb8] sm:$0xff]
    %v175 = vld [vmem:[#allocation5 + $0xc0] sm:$0xff]
    %v176 = vld [vmem:[#allocation5 + $0xc8] sm:$0xff]
    %v177 = vld [vmem:[#allocation5 + $0xd0] sm:$0xff]
    %v178 = vld [vmem:[#allocation5 + $0xd8] sm:$0xff]
    %v179 = vld [vmem:[#allocation5 + $0xe0] sm:$0xff]
    %v180 = vld [vmem:[#allocation5 + $0xe8] sm:$0xff]
    %v181 = vld [vmem:[#allocation5 + $0xf0] sm:$0xff]
    %v182 = vld [vmem:[#allocation5 + $0xf8] sm:$0xff]
    %v183 = vld [vmem:[#allocation5 + $0x100] sm:$0xff]
    %v184 = vld [vmem:[#allocation5 + $0x108] sm:$0xff]
    %v185 = vld [vmem:[#allocation5 + $0x110] sm:$0xff]
    %v186 = vld [vmem:[#allocation5 + $0x118] sm:$0xff]
    %v187 = vld [vmem:[#allocation5 + $0x120] sm:$0xff]
    %v188 = vld [vmem:[#allocation5 + $0x128] sm:$0xff]
    %v189 = vld [vmem:[#allocation5 + $0x130] sm:$0xff]
    %v190 = vld [vmem:[#allocation5 + $0x138] sm:$0xff]
    %v191 = vld [vmem:[#allocation5 + $0x140] sm:$0xff]
    %v192 = vld [vmem:[#allocation5 + $0x148] sm:$0xff]
    %v193 = vld [vmem:[#allocation5 + $0x150] sm:$0xff]
    %v194 = vld [vmem:[#allocation5 + $0x158] sm:$0xff]
    %v195 = vld [vmem:[#allocation5 + $0x160] sm:$0xff]
    %v196 = vld [vmem:[#allocation5 + $0x168] sm:$0xff]
    %v197 = vld [vmem:[#allocation5 + $0x170] sm:$0xff]
    %v198 = vld [vmem:[#allocation5 + $0x178] sm:$0xff]
    %v199 = vld [vmem:[#allocation2] sm:$0xff]
    %v200 = vld [vmem:[#allocation7] sm:$0xff]
    %v201 = vld [vmem:[#allocation7 + $0x8] sm:$0xff]
    %v202 = vld [vmem:[#allocation7 + $0x10] sm:$0xff]
    %vm203 = vcmask 64512
    %v205 = vsel %vm203, %v199, 0
    %207 = vmatprep.subr.mxu0 %v201
    %208 = vmatpush1.msra.mxu0 %v200
    %209 = vmatprep.subr.mxu0 0.0
    %210 = vmatpush1.msra.mxu0 0.0
    %211 = vmatprep.subr.mxu0 0.0
    %212 = vmatpush1.msra.mxu0 0.0
    %213 = vmatprep.subr.mxu0 0.0
    %214 = vmatpush1.msra.mxu0 0.0
    %215 = vmatprep.subr.mxu0 0.0
    %216 = vmatpush1.msra.mxu0 0.0
    %217 = vmatprep.subr.mxu0 0.0
    %218 = vmatpush1.msra.mxu0 0.0
    %219 = vmatprep.subr.mxu0 0.0
    %220 = vmatpush1.msra.mxu0 0.0
    %221 = vmatprep.subr.mxu0 0.0
    %222 = vmatpush1.msra.mxu0 0.0
    %223 = vmatprep.subr.mxu0 0.0
    %224 = vmatpush1.msra.mxu0 0.0
    %225 = vmatprep.subr.mxu0 0.0
    %226 = vmatpush1.msra.mxu0 0.0
    %227 = vmatprep.subr.mxu0 0.0
    %228 = vmatpush1.msra.mxu0 0.0
    %229 = vmatprep.subr.mxu0 0.0
    %230 = vmatpush1.msra.mxu0 0.0
    %231 = vmatprep.subr.mxu0 0.0
    %232 = vmatpush1.msra.mxu0 0.0
    %233 = vmatprep.subr.mxu0 0.0
    %234 = vmatpush1.msra.mxu0 0.0
    %235 = vmatprep.subr.mxu0 0.0
    %236 = vmatpush1.msra.mxu0 0.0
    %237 = vmatprep.subr.mxu0 0.0
    %238 = vmatpush1.msra.mxu0 0.0
    %239 = vmatprep.subr.mxu0 0.0
    %240 = vmatpush1.msra.mxu0 0.0
    %241 = vmatprep.subr.mxu0 0.0
    %242 = vmatpush1.msra.mxu0 0.0
    %243 = vmatprep.subr.mxu0 0.0
    %244 = vmatpush1.msra.mxu0 0.0
    %245 = vmatprep.subr.mxu0 0.0
    %246 = vmatpush1.msra.mxu0 0.0
    %247 = vmatprep.subr.mxu0 0.0
    %248 = vmatpush1.msra.mxu0 0.0
    %249 = vmatprep.subr.mxu0 0.0
    %250 = vmatpush1.msra.mxu0 0.0
    %251 = vmatprep.subr.mxu0 0.0
    %252 = vmatpush1.msra.mxu0 0.0
    %253 = vmatprep.subr.mxu0 0.0
    %254 = vmatpush1.msra.mxu0 0.0
    %255 = vmatprep.subr.mxu0 0.0
    %256 = vmatpush1.msra.mxu0 0.0
    %257 = vmatprep.subr.mxu0 0.0
    %258 = vmatpush1.msra.mxu0 0.0
    %259 = vmatprep.subr.mxu0 0.0
    %260 = vmatpush1.msra.mxu0 0.0
    %261 = vmatprep.subr.mxu0 0.0
    %262 = vmatpush1.msra.mxu0 0.0
    %263 = vmatprep.subr.mxu0 0.0
    %264 = vmatpush1.msra.mxu0 0.0
    %265 = vmatprep.subr.mxu0 0.0
    %266 = vmatpush1.msra.mxu0 0.0
    %267 = vmatprep.subr.mxu0 0.0
    %268 = vmatpush1.msra.mxu0 0.0
    %269 = vmatprep.subr.mxu0 0.0
    %270 = vmatpush1.msra.mxu0 0.0
    %271 = vmatprep.mubr.f32.mxu0 0.0
    %272 = vmatmul.mubr.f32.gmra.mrb[0].mxu0 %v205
    %v273 = vpop.f32.mrb[0].mxu0
    %v274 = vadd.f32 0.0, %v273
    %v275 = vpop.f32.mrb[0].mxu0
    %v276 = vadd.f32 0.0, %v275
    %277 = vdwg.mxu0
    %278 = vmatprep.subr.mxu0 0.0
    %279 = vmatpush1.msra.mxu0 %v202
    %280 = vmatprep.subr.mxu0 0.0
    %281 = vmatpush1.msra.mxu0 0.0
    %282 = vmatprep.subr.mxu0 0.0
    %283 = vmatpush1.msra.mxu0 0.0
    %284 = vmatprep.subr.mxu0 0.0
    %285 = vmatpush1.msra.mxu0 0.0
    %286 = vmatprep.subr.mxu0 0.0
    %287 = vmatpush1.msra.mxu0 0.0
    %288 = vmatprep.subr.mxu0 0.0
    %289 = vmatpush1.msra.mxu0 0.0
    %290 = vmatprep.subr.mxu0 0.0
    %291 = vmatpush1.msra.mxu0 0.0
    %292 = vmatprep.subr.mxu0 0.0
    %293 = vmatpush1.msra.mxu0 0.0
    %294 = vmatprep.subr.mxu0 0.0
    %295 = vmatpush1.msra.mxu0 0.0
    %296 = vmatprep.subr.mxu0 0.0
    %297 = vmatpush1.msra.mxu0 0.0
    %298 = vmatprep.subr.mxu0 0.0
    %299 = vmatpush1.msra.mxu0 0.0
    %300 = vmatprep.subr.mxu0 0.0
    %301 = vmatpush1.msra.mxu0 0.0
    %302 = vmatprep.subr.mxu0 0.0
    %303 = vmatpush1.msra.mxu0 0.0
    %304 = vmatprep.subr.mxu0 0.0
    %305 = vmatpush1.msra.mxu0 0.0
    %306 = vmatprep.subr.mxu0 0.0
    %307 = vmatpush1.msra.mxu0 0.0
    %308 = vmatprep.subr.mxu0 0.0
    %309 = vmatpush1.msra.mxu0 0.0
    %310 = vmatprep.subr.mxu0 0.0
    %311 = vmatpush1.msra.mxu0 0.0
    %312 = vmatprep.subr.mxu0 0.0
    %313 = vmatpush1.msra.mxu0 0.0
    %314 = vmatprep.subr.mxu0 0.0
    %315 = vmatpush1.msra.mxu0 0.0
    %316 = vmatprep.subr.mxu0 0.0
    %317 = vmatpush1.msra.mxu0 0.0
    %318 = vmatprep.subr.mxu0 0.0
    %319 = vmatpush1.msra.mxu0 0.0
    %320 = vmatprep.subr.mxu0 0.0
    %321 = vmatpush1.msra.mxu0 0.0
    %322 = vmatprep.subr.mxu0 0.0
    %323 = vmatpush1.msra.mxu0 0.0
    %324 = vmatprep.subr.mxu0 0.0
    %325 = vmatpush1.msra.mxu0 0.0
    %326 = vmatprep.subr.mxu0 0.0
    %327 = vmatpush1.msra.mxu0 0.0
    %328 = vmatprep.subr.mxu0 0.0
    %329 = vmatpush1.msra.mxu0 0.0
    %330 = vmatprep.subr.mxu0 0.0
    %331 = vmatpush1.msra.mxu0 0.0
    %332 = vmatprep.subr.mxu0 0.0
    %333 = vmatpush1.msra.mxu0 0.0
    %334 = vmatprep.subr.mxu0 0.0
    %335 = vmatpush1.msra.mxu0 0.0
    %336 = vmatprep.subr.mxu0 0.0
    %337 = vmatpush1.msra.mxu0 0.0
    %338 = vmatprep.subr.mxu0 0.0
    %339 = vmatpush1.msra.mxu0 0.0
    %340 = vmatprep.subr.mxu0 0.0
    %341 = vmatpush1.msra.mxu0 0.0
    %342 = vmatprep.mubr.f32.mxu0 0.0
    %343 = vmatmul.mubr.f32.gmra.mrb[0].mxu0 %v205
    %v344 = vpop.f32.mrb[0].mxu0
    %v345 = vadd.f32 0.0, %v344
    %v346 = vpop.f32.mrb[0].mxu0
    %347 = vdwg.mxu0
    %348 = vmatprep.subr.mxu0 %v152
    %349 = vmatpush1.msra.mxu0 %v151
    %350 = vmatprep.subr.mxu0 %v155
    %351 = vmatpush1.msra.mxu0 %v154
    %352 = vmatprep.subr.mxu0 %v158
    %353 = vmatpush1.msra.mxu0 %v157
    %354 = vmatprep.subr.mxu0 %v161
    %355 = vmatpush1.msra.mxu0 %v160
    %356 = vmatprep.subr.mxu0 %v164
    %357 = vmatpush1.msra.mxu0 %v163
    %358 = vmatprep.subr.mxu0 %v167
    %359 = vmatpush1.msra.mxu0 %v166
    %360 = vmatprep.subr.mxu0 %v170
    %361 = vmatpush1.msra.mxu0 %v169
    %362 = vmatprep.subr.mxu0 %v173
    %363 = vmatpush1.msra.mxu0 %v172
    %364 = vmatprep.subr.mxu0 %v176
    %365 = vmatpush1.msra.mxu0 %v175
    %366 = vmatprep.subr.mxu0 %v179
    %367 = vmatpush1.msra.mxu0 %v178
    %368 = vmatprep.subr.mxu0 %v182
    %369 = vmatpush1.msra.mxu0 %v181
    %370 = vmatprep.subr.mxu0 %v185
    %371 = vmatpush1.msra.mxu0 %v184
    %372 = vmatprep.subr.mxu0 %v188
    %373 = vmatpush1.msra.mxu0 %v187
    %374 = vmatprep.subr.mxu0 %v191
    %375 = vmatpush1.msra.mxu0 %v190
    %376 = vmatprep.subr.mxu0 %v194
    %377 = vmatpush1.msra.mxu0 %v193
    %378 = vmatprep.subr.mxu0 %v197
    %379 = vmatpush1.msra.mxu0 %v196
    %380 = vmatprep.subr.mxu0 0.0
    %381 = vmatpush1.msra.mxu0 0.0
    %382 = vmatprep.subr.mxu0 0.0
    %383 = vmatpush1.msra.mxu0 0.0
    %384 = vmatprep.subr.mxu0 0.0
    %385 = vmatpush1.msra.mxu0 0.0
    %386 = vmatprep.subr.mxu0 0.0
    %387 = vmatpush1.msra.mxu0 0.0
    %388 = vmatprep.subr.mxu0 0.0
    %389 = vmatpush1.msra.mxu0 0.0
    %390 = vmatprep.subr.mxu0 0.0
    %391 = vmatpush1.msra.mxu0 0.0
    %392 = vmatprep.subr.mxu0 0.0
    %393 = vmatpush1.msra.mxu0 0.0
    %394 = vmatprep.subr.mxu0 0.0
    %395 = vmatpush1.msra.mxu0 0.0
    %396 = vmatprep.subr.mxu0 0.0
    %397 = vmatpush1.msra.mxu0 0.0
    %398 = vmatprep.subr.mxu0 0.0
    %399 = vmatpush1.msra.mxu0 0.0
    %400 = vmatprep.subr.mxu0 0.0
    %401 = vmatpush1.msra.mxu0 0.0
    %402 = vmatprep.subr.mxu0 0.0
    %403 = vmatpush1.msra.mxu0 0.0
    %404 = vmatprep.subr.mxu0 0.0
    %405 = vmatpush1.msra.mxu0 0.0
    %406 = vmatprep.subr.mxu0 0.0
    %407 = vmatpush1.msra.mxu0 0.0
    %408 = vmatprep.subr.mxu0 0.0
    %409 = vmatpush1.msra.mxu0 0.0
    %410 = vmatprep.subr.mxu0 0.0
    %411 = vmatpush1.msra.mxu0 0.0
    %412 = vmatprep.mubr.f32.mxu0 0.0
    %413 = vmatmul.mubr.f32.gmra.mrb[0].mxu0 %v150
    %v414 = vpop.f32.mrb[0].mxu0
    %v415 = vadd.f32 %v274, %v414
    %v416 = vpop.f32.mrb[0].mxu0
    %v417 = vadd.f32 %v276, %v416
    %418 = vdwg.mxu0
    %419 = vmatprep.subr.mxu0 0.0
    %420 = vmatpush1.msra.mxu0 %v153
    %421 = vmatprep.subr.mxu0 0.0
    %422 = vmatpush1.msra.mxu0 %v156
    %423 = vmatprep.subr.mxu0 0.0
    %424 = vmatpush1.msra.mxu0 %v159
    %425 = vmatprep.subr.mxu0 0.0
    %426 = vmatpush1.msra.mxu0 %v162
    %427 = vmatprep.subr.mxu0 0.0
    %428 = vmatpush1.msra.mxu0 %v165
    %429 = vmatprep.subr.mxu0 0.0
    %430 = vmatpush1.msra.mxu0 %v168
    %431 = vmatprep.subr.mxu0 0.0
    %432 = vmatpush1.msra.mxu0 %v171
    %433 = vmatprep.subr.mxu0 0.0
    %434 = vmatpush1.msra.mxu0 %v174
    %435 = vmatprep.subr.mxu0 0.0
    %436 = vmatpush1.msra.mxu0 %v177
    %437 = vmatprep.subr.mxu0 0.0
    %438 = vmatpush1.msra.mxu0 %v180
    %439 = vmatprep.subr.mxu0 0.0
    %440 = vmatpush1.msra.mxu0 %v183
    %441 = vmatprep.subr.mxu0 0.0
    %442 = vmatpush1.msra.mxu0 %v186
    %443 = vmatprep.subr.mxu0 0.0
    %444 = vmatpush1.msra.mxu0 %v189
    %445 = vmatprep.subr.mxu0 0.0
    %446 = vmatpush1.msra.mxu0 %v192
    %447 = vmatprep.subr.mxu0 0.0
    %448 = vmatpush1.msra.mxu0 %v195
    %449 = vmatprep.subr.mxu0 0.0
    %450 = vmatpush1.msra.mxu0 %v198
    %451 = vmatprep.subr.mxu0 0.0
    %452 = vmatpush1.msra.mxu0 0.0
    %453 = vmatprep.subr.mxu0 0.0
    %454 = vmatpush1.msra.mxu0 0.0
    %455 = vmatprep.subr.mxu0 0.0
    %456 = vmatpush1.msra.mxu0 0.0
    %457 = vmatprep.subr.mxu0 0.0
    %458 = vmatpush1.msra.mxu0 0.0
    %459 = vmatprep.subr.mxu0 0.0
    %460 = vmatpush1.msra.mxu0 0.0
    %461 = vmatprep.subr.mxu0 0.0
    %462 = vmatpush1.msra.mxu0 0.0
    %463 = vmatprep.subr.mxu0 0.0
    %464 = vmatpush1.msra.mxu0 0.0
    %465 = vmatprep.subr.mxu0 0.0
    %466 = vmatpush1.msra.mxu0 0.0
    %467 = vmatprep.subr.mxu0 0.0
    %468 = vmatpush1.msra.mxu0 0.0
    %469 = vmatprep.subr.mxu0 0.0
    %470 = vmatpush1.msra.mxu0 0.0
    %471 = vmatprep.subr.mxu0 0.0
    %472 = vmatpush1.msra.mxu0 0.0
    %473 = vmatprep.subr.mxu0 0.0
    %474 = vmatpush1.msra.mxu0 0.0
    %475 = vmatprep.subr.mxu0 0.0
    %476 = vmatpush1.msra.mxu0 0.0
    %477 = vmatprep.subr.mxu0 0.0
    %478 = vmatpush1.msra.mxu0 0.0
    %479 = vmatprep.subr.mxu0 0.0
    %480 = vmatpush1.msra.mxu0 0.0
    %481 = vmatprep.subr.mxu0 0.0
    %482 = vmatpush1.msra.mxu0 0.0
    %483 = vmatprep.mubr.f32.mxu0 0.0
    %484 = vmatmul.mubr.f32.gmra.mrb[0].mxu0 %v150
    %v485 = vpop.f32.mrb[0].mxu0
    %v486 = vadd.f32 %v345, %v485
    %v487 = vpop.f32.mrb[0].mxu0
    %488 = vdwg.mxu0
    %v489 = vld [vmem:[#allocation8] sm:$0x7]
    %v491 = vlaneseq
    %v492 = vshrl.u32 %v491, 7
    %v493 = vsub.s32 0, %v492
    %v494 = vrot.slane %v489, %v493
    %v495 = vlaneseq
    %v496 = vshrl.u32 %v495, 7
    %v497 = vsub.s32 1, %v496
    %v498 = vrot.slane %v489, %v497
    %v499 = vlaneseq
    %v500 = vshrl.u32 %v499, 7
    %v501 = vsub.s32 2, %v500
    %v502 = vrot.slane %v489, %v501
    %v506 = vadd.f32 %v415, %v494
    %v507 = vadd.f32 %v417, %v498
    %v508 = vadd.f32 %v486, %v502
    %v509 = vxor.u32 %v506, 2147483648
    %v510 = vxor.u32 %v507, 2147483648
    %v511 = vmul.f32 %v509, 1.442695
    %v512 = vpow.pop %v511
    %v513 = vmul.f32 %v510, 1.442695
    %v514 = vpow.pop %v513
    %v515 = vadd.f32 %v512, 1.0
    %v516 = vadd.f32 %v514, 1.0
    %v517 = vrcp.pop %v515
    %v518 = vmul.f32 1.0, %v517
    %v519 = vrcp.pop %v516
    %v520 = vmul.f32 1.0, %v519
    %v521 = vtanh.pop %v508
    %v522 = vmul.f32 %v518, %v521
    %v523 = vtanh.pop %v522
    %v524 = vmul.f32 %v520, %v523
    %v525 = vld [vmem:[#allocation10] sm:$0xff]
    %v526 = vld [vmem:[#allocation10 + $0x8] sm:$0xff]
    %v527 = vld [vmem:[#allocation10 + $0x10] sm:$0xff]
    %v528 = vld [vmem:[#allocation10 + $0x18] sm:$0xff]
    %v529 = vld [vmem:[#allocation10 + $0x20] sm:$0xff]
    %v530 = vld [vmem:[#allocation10 + $0x28] sm:$0xff]
    %v531 = vld [vmem:[#allocation10 + $0x30] sm:$0xff]
    %v532 = vld [vmem:[#allocation10 + $0x38] sm:$0xff]
    %v533 = vld [vmem:[#allocation10 + $0x40] sm:$0xff]
    %v534 = vld [vmem:[#allocation10 + $0x48] sm:$0xff]
    %v535 = vld [vmem:[#allocation10 + $0x50] sm:$0xff]
    %v536 = vld [vmem:[#allocation10 + $0x58] sm:$0xff]
    %v537 = vld [vmem:[#allocation10 + $0x60] sm:$0xff]
    %v538 = vld [vmem:[#allocation10 + $0x68] sm:$0xff]
    %v539 = vld [vmem:[#allocation10 + $0x70] sm:$0xff]
    %v540 = vld [vmem:[#allocation10 + $0x78] sm:$0xff]
    %v541 = vld [vmem:[#allocation10 + $0x80] sm:$0xff]
    %v542 = vld [vmem:[#allocation10 + $0x88] sm:$0xff]
    %v543 = vld [vmem:[#allocation10 + $0x90] sm:$0xff]
    %v544 = vld [vmem:[#allocation10 + $0x98] sm:$0xff]
    %v545 = vld [vmem:[#allocation10 + $0xa0] sm:$0xff]
    %v546 = vld [vmem:[#allocation10 + $0xa8] sm:$0xff]
    %v547 = vld [vmem:[#allocation10 + $0xb0] sm:$0xff]
    %v548 = vld [vmem:[#allocation10 + $0xb8] sm:$0xff]
    %v549 = vld [vmem:[#allocation10 + $0xc0] sm:$0xff]
    %v550 = vld [vmem:[#allocation10 + $0xc8] sm:$0xff]
    %v551 = vld [vmem:[#allocation10 + $0xd0] sm:$0xff]
    %v552 = vld [vmem:[#allocation10 + $0xd8] sm:$0xff]
    %v553 = vld [vmem:[#allocation10 + $0xe0] sm:$0xff]
    %v554 = vld [vmem:[#allocation10 + $0xe8] sm:$0xff]
    %v555 = vld [vmem:[#allocation10 + $0xf0] sm:$0xff]
    %v556 = vld [vmem:[#allocation10 + $0xf8] sm:$0xff]
    %v557 = vld [vmem:[#allocation10 + $0x100] sm:$0xff]
    %v558 = vld [vmem:[#allocation10 + $0x108] sm:$0xff]
    %v559 = vld [vmem:[#allocation10 + $0x110] sm:$0xff]
    %v560 = vld [vmem:[#allocation10 + $0x118] sm:$0xff]
    %v561 = vld [vmem:[#allocation10 + $0x120] sm:$0xff]
    %v562 = vld [vmem:[#allocation10 + $0x128] sm:$0xff]
    %v563 = vld [vmem:[#allocation10 + $0x130] sm:$0xff]
    %v564 = vld [vmem:[#allocation10 + $0x138] sm:$0xff]
    %v565 = vld [vmem:[#allocation10 + $0x140] sm:$0xff]
    %v566 = vld [vmem:[#allocation10 + $0x148] sm:$0xff]
    %v567 = vld [vmem:[#allocation10 + $0x150] sm:$0xff]
    %v568 = vld [vmem:[#allocation10 + $0x158] sm:$0xff]
    %v569 = vld [vmem:[#allocation10 + $0x160] sm:$0xff]
    %v570 = vld [vmem:[#allocation10 + $0x168] sm:$0xff]
    %v571 = vld [vmem:[#allocation10 + $0x170] sm:$0xff]
    %v572 = vld [vmem:[#allocation10 + $0x178] sm:$0xff]
    %v573 = vld [vmem:[%s6] sm:$0x7]
    %v575 = vlaneseq
    %v576 = vshrl.u32 %v575, 7
    %v577 = vsub.s32 0, %v576
    %v578 = vrot.slane %v573, %v577
    %v579 = vlaneseq
    %v580 = vshrl.u32 %v579, 7
    %v581 = vsub.s32 1, %v580
    %v582 = vrot.slane %v573, %v581
    %v583 = vlaneseq
    %v584 = vshrl.u32 %v583, 7
    %v585 = vsub.s32 2, %v584
    %v586 = vrot.slane %v573, %v585
    %590 = vmatprep.subr.mxu0 %v526
    %591 = vmatpush1.msra.mxu0 %v525
    %592 = vmatprep.subr.mxu0 %v529
    %593 = vmatpush1.msra.mxu0 %v528
    %594 = vmatprep.subr.mxu0 %v532
    %595 = vmatpush1.msra.mxu0 %v531
    %596 = vmatprep.subr.mxu0 %v535
    %597 = vmatpush1.msra.mxu0 %v534
    %598 = vmatprep.subr.mxu0 %v538
    %599 = vmatpush1.msra.mxu0 %v537
    %600 = vmatprep.subr.mxu0 %v541
    %601 = vmatpush1.msra.mxu0 %v540
    %602 = vmatprep.subr.mxu0 %v544
    %603 = vmatpush1.msra.mxu0 %v543
    %604 = vmatprep.subr.mxu0 %v547
    %605 = vmatpush1.msra.mxu0 %v546
    %606 = vmatprep.subr.mxu0 %v550
    %607 = vmatpush1.msra.mxu0 %v549
    %608 = vmatprep.subr.mxu0 %v553
    %609 = vmatpush1.msra.mxu0 %v552
    %610 = vmatprep.subr.mxu0 %v556
    %611 = vmatpush1.msra.mxu0 %v555
    %612 = vmatprep.subr.mxu0 %v559
    %613 = vmatpush1.msra.mxu0 %v558
    %614 = vmatprep.subr.mxu0 %v562
    %615 = vmatpush1.msra.mxu0 %v561
    %616 = vmatprep.subr.mxu0 %v565
    %617 = vmatpush1.msra.mxu0 %v564
    %618 = vmatprep.subr.mxu0 %v568
    %619 = vmatpush1.msra.mxu0 %v567
    %620 = vmatprep.subr.mxu0 %v571
    %621 = vmatpush1.msra.mxu0 %v570
    %622 = vmatprep.subr.mxu0 0.0
    %623 = vmatpush1.msra.mxu0 0.0
    %624 = vmatprep.subr.mxu0 0.0
    %625 = vmatpush1.msra.mxu0 0.0
    %626 = vmatprep.subr.mxu0 0.0
    %627 = vmatpush1.msra.mxu0 0.0
    %628 = vmatprep.subr.mxu0 0.0
    %629 = vmatpush1.msra.mxu0 0.0
    %630 = vmatprep.subr.mxu0 0.0
    %631 = vmatpush1.msra.mxu0 0.0
    %632 = vmatprep.subr.mxu0 0.0
    %633 = vmatpush1.msra.mxu0 0.0
    %634 = vmatprep.subr.mxu0 0.0
    %635 = vmatpush1.msra.mxu0 0.0
    %636 = vmatprep.subr.mxu0 0.0
    %637 = vmatpush1.msra.mxu0 0.0
    %638 = vmatprep.subr.mxu0 0.0
    %639 = vmatpush1.msra.mxu0 0.0
    %640 = vmatprep.subr.mxu0 0.0
    %641 = vmatpush1.msra.mxu0 0.0
    %642 = vmatprep.subr.mxu0 0.0
    %643 = vmatpush1.msra.mxu0 0.0
    %644 = vmatprep.subr.mxu0 0.0
    %645 = vmatpush1.msra.mxu0 0.0
    %646 = vmatprep.subr.mxu0 0.0
    %647 = vmatpush1.msra.mxu0 0.0
    %648 = vmatprep.subr.mxu0 0.0
    %649 = vmatpush1.msra.mxu0 0.0
    %650 = vmatprep.subr.mxu0 0.0
    %651 = vmatpush1.msra.mxu0 0.0
    %652 = vmatprep.subr.mxu0 0.0
    %653 = vmatpush1.msra.mxu0 0.0
    %654 = vmatprep.mubr.f32.mxu0 0.0
    %655 = vmatmul.mubr.f32.gmra.mrb[0].mxu0 %v524
    %v656 = vpop.f32.mrb[0].mxu0
    %v657 = vadd.f32 %v578, %v656
    %v658 = vpop.f32.mrb[0].mxu0
    %v659 = vadd.f32 %v582, %v658
    %660 = vdwg.mxu0
    %661 = vmatprep.subr.mxu0 0.0
    %662 = vmatpush1.msra.mxu0 %v527
    %663 = vmatprep.subr.mxu0 0.0
    %664 = vmatpush1.msra.mxu0 %v530
    %665 = vmatprep.subr.mxu0 0.0
    %666 = vmatpush1.msra.mxu0 %v533
    %667 = vmatprep.subr.mxu0 0.0
    %668 = vmatpush1.msra.mxu0 %v536
    %669 = vmatprep.subr.mxu0 0.0
    %670 = vmatpush1.msra.mxu0 %v539
    %671 = vmatprep.subr.mxu0 0.0
    %672 = vmatpush1.msra.mxu0 %v542
    %673 = vmatprep.subr.mxu0 0.0
    %674 = vmatpush1.msra.mxu0 %v545
    %675 = vmatprep.subr.mxu0 0.0
    %676 = vmatpush1.msra.mxu0 %v548
    %677 = vmatprep.subr.mxu0 0.0
    %678 = vmatpush1.msra.mxu0 %v551
    %679 = vmatprep.subr.mxu0 0.0
    %680 = vmatpush1.msra.mxu0 %v554
    %681 = vmatprep.subr.mxu0 0.0
    %682 = vmatpush1.msra.mxu0 %v557
    %683 = vmatprep.subr.mxu0 0.0
    %684 = vmatpush1.msra.mxu0 %v560
    %685 = vmatprep.subr.mxu0 0.0
    %686 = vmatpush1.msra.mxu0 %v563
    %687 = vmatprep.subr.mxu0 0.0
    %688 = vmatpush1.msra.mxu0 %v566
    %689 = vmatprep.subr.mxu0 0.0
    %690 = vmatpush1.msra.mxu0 %v569
    %691 = vmatprep.subr.mxu0 0.0
    %692 = vmatpush1.msra.mxu0 %v572
    %693 = vmatprep.subr.mxu0 0.0
    %694 = vmatpush1.msra.mxu0 0.0
    %695 = vmatprep.subr.mxu0 0.0
    %696 = vmatpush1.msra.mxu0 0.0
    %697 = vmatprep.subr.mxu0 0.0
    %698 = vmatpush1.msra.mxu0 0.0
    %699 = vmatprep.subr.mxu0 0.0
    %700 = vmatpush1.msra.mxu0 0.0
    %701 = vmatprep.subr.mxu0 0.0
    %702 = vmatpush1.msra.mxu0 0.0
    %703 = vmatprep.subr.mxu0 0.0
    %704 = vmatpush1.msra.mxu0 0.0
    %705 = vmatprep.subr.mxu0 0.0
    %706 = vmatpush1.msra.mxu0 0.0
    %707 = vmatprep.subr.mxu0 0.0
    %708 = vmatpush1.msra.mxu0 0.0
    %709 = vmatprep.subr.mxu0 0.0
    %710 = vmatpush1.msra.mxu0 0.0
    %711 = vmatprep.subr.mxu0 0.0
    %712 = vmatpush1.msra.mxu0 0.0
    %713 = vmatprep.subr.mxu0 0.0
    %714 = vmatpush1.msra.mxu0 0.0
    %715 = vmatprep.subr.mxu0 0.0
    %716 = vmatpush1.msra.mxu0 0.0
    %717 = vmatprep.subr.mxu0 0.0
    %718 = vmatpush1.msra.mxu0 0.0
    %719 = vmatprep.subr.mxu0 0.0
    %720 = vmatpush1.msra.mxu0 0.0
    %721 = vmatprep.subr.mxu0 0.0
    %722 = vmatpush1.msra.mxu0 0.0
    %723 = vmatprep.subr.mxu0 0.0
    %724 = vmatpush1.msra.mxu0 0.0
    %725 = vmatprep.mubr.f32.mxu0 0.0
    %726 = vmatmul.mubr.f32.gmra.mrb[0].mxu0 %v524
    %v727 = vpop.f32.mrb[0].mxu0
    %v728 = vadd.f32 %v586, %v727
    %v729 = vpop.f32.mrb[0].mxu0
    %730 = vdwg.mxu0
    %v731 = vxor.u32 %v657, 2147483648
    %v732 = vxor.u32 %v659, 2147483648
    %v733 = vmul.f32 %v731, 1.442695
    %v734 = vpow.pop %v733
    %v735 = vmul.f32 %v732, 1.442695
    %v736 = vpow.pop %v735
    %v737 = vadd.f32 %v734, 1.0
    %v738 = vadd.f32 %v736, 1.0
    %v739 = vrcp.pop %v737
    %v740 = vmul.f32 1.0, %v739
    %v741 = vrcp.pop %v738
    %v742 = vmul.f32 1.0, %v741
    %v743 = vtanh.pop %v728
    %v744 = vmul.f32 %v740, %v743
    %v745 = vtanh.pop %v744
    %v746 = vmul.f32 %v742, %v745
    %s747 = scalar_lea.vmem [#allocation10], 384
    %v748 = vld [vmem:[%s747] sm:$0xff]
    %v749 = vld [vmem:[%s747 + $0x8] sm:$0xff]
    %v750 = vld [vmem:[%s747 + $0x10] sm:$0xff]
    %v751 = vld [vmem:[%s747 + $0x18] sm:$0xff]
    %v752 = vld [vmem:[%s747 + $0x20] sm:$0xff]
    %v753 = vld [vmem:[%s747 + $0x28] sm:$0xff]
    %v754 = vld [vmem:[%s747 + $0x30] sm:$0xff]
    %v755 = vld [vmem:[%s747 + $0x38] sm:$0xff]
    %v756 = vld [vmem:[%s747 + $0x40] sm:$0xff]
    %v757 = vld [vmem:[%s747 + $0x48] sm:$0xff]
    %v758 = vld [vmem:[%s747 + $0x50] sm:$0xff]
    %v759 = vld [vmem:[%s747 + $0x58] sm:$0xff]
    %v760 = vld [vmem:[%s747 + $0x60] sm:$0xff]
    %v761 = vld [vmem:[%s747 + $0x68] sm:$0xff]
    %v762 = vld [vmem:[%s747 + $0x70] sm:$0xff]
    %v763 = vld [vmem:[%s747 + $0x78] sm:$0xff]
    %v764 = vld [vmem:[%s747 + $0x80] sm:$0xff]
    %v765 = vld [vmem:[%s747 + $0x88] sm:$0xff]
    %v766 = vld [vmem:[%s747 + $0x90] sm:$0xff]
    %v767 = vld [vmem:[%s747 + $0x98] sm:$0xff]
    %v768 = vld [vmem:[%s747 + $0xa0] sm:$0xff]
    %v769 = vld [vmem:[%s747 + $0xa8] sm:$0xff]
    %v770 = vld [vmem:[%s747 + $0xb0] sm:$0xff]
    %v771 = vld [vmem:[%s747 + $0xb8] sm:$0xff]
    %v772 = vld [vmem:[%s747 + $0xc0] sm:$0xff]
    %v773 = vld [vmem:[%s747 + $0xc8] sm:$0xff]
    %v774 = vld [vmem:[%s747 + $0xd0] sm:$0xff]
    %v775 = vld [vmem:[%s747 + $0xd8] sm:$0xff]
    %v776 = vld [vmem:[%s747 + $0xe0] sm:$0xff]
    %v777 = vld [vmem:[%s747 + $0xe8] sm:$0xff]
    %v778 = vld [vmem:[%s747 + $0xf0] sm:$0xff]
    %v779 = vld [vmem:[%s747 + $0xf8] sm:$0xff]
    %v780 = vld [vmem:[%s747 + $0x100] sm:$0xff]
    %v781 = vld [vmem:[%s747 + $0x108] sm:$0xff]
    %v782 = vld [vmem:[%s747 + $0x110] sm:$0xff]
    %v783 = vld [vmem:[%s747 + $0x118] sm:$0xff]
    %v784 = vld [vmem:[%s747 + $0x120] sm:$0xff]
    %v785 = vld [vmem:[%s747 + $0x128] sm:$0xff]
    %v786 = vld [vmem:[%s747 + $0x130] sm:$0xff]
    %v787 = vld [vmem:[%s747 + $0x138] sm:$0xff]
    %v788 = vld [vmem:[%s747 + $0x140] sm:$0xff]
    %v789 = vld [vmem:[%s747 + $0x148] sm:$0xff]
    %v790 = vld [vmem:[%s747 + $0x150] sm:$0xff]
    %v791 = vld [vmem:[%s747 + $0x158] sm:$0xff]
    %v792 = vld [vmem:[%s747 + $0x160] sm:$0xff]
    %v793 = vld [vmem:[%s747 + $0x168] sm:$0xff]
    %v794 = vld [vmem:[%s747 + $0x170] sm:$0xff]
    %v795 = vld [vmem:[%s747 + $0x178] sm:$0xff]
    %s796 = scalar_lea.vmem %s6, 3
    %v797 = vld [vmem:[%s796] sm:$0x7]
    %v799 = vlaneseq
    %v800 = vshrl.u32 %v799, 7
    %v801 = vsub.s32 0, %v800
    %v802 = vrot.slane %v797, %v801
    %v803 = vlaneseq
    %v804 = vshrl.u32 %v803, 7
    %v805 = vsub.s32 1, %v804
    %v806 = vrot.slane %v797, %v805
    %v807 = vlaneseq
    %v808 = vshrl.u32 %v807, 7
    %v809 = vsub.s32 2, %v808
    %v810 = vrot.slane %v797, %v809
    %814 = vmatprep.subr.mxu0 %v749
    %815 = vmatpush1.msra.mxu0 %v748
    %816 = vmatprep.subr.mxu0 %v752
    %817 = vmatpush1.msra.mxu0 %v751
    %818 = vmatprep.subr.mxu0 %v755
    %819 = vmatpush1.msra.mxu0 %v754
    %820 = vmatprep.subr.mxu0 %v758
    %821 = vmatpush1.msra.mxu0 %v757
    %822 = vmatprep.subr.mxu0 %v761
    %823 = vmatpush1.msra.mxu0 %v760
    %824 = vmatprep.subr.mxu0 %v764
    %825 = vmatpush1.msra.mxu0 %v763
    %826 = vmatprep.subr.mxu0 %v767
    %827 = vmatpush1.msra.mxu0 %v766
    %828 = vmatprep.subr.mxu0 %v770
    %829 = vmatpush1.msra.mxu0 %v769
    %830 = vmatprep.subr.mxu0 %v773
    %831 = vmatpush1.msra.mxu0 %v772
    %832 = vmatprep.subr.mxu0 %v776
    %833 = vmatpush1.msra.mxu0 %v775
    %834 = vmatprep.subr.mxu0 %v779
    %835 = vmatpush1.msra.mxu0 %v778
    %836 = vmatprep.subr.mxu0 %v782
    %837 = vmatpush1.msra.mxu0 %v781
    %838 = vmatprep.subr.mxu0 %v785
    %839 = vmatpush1.msra.mxu0 %v784
    %840 = vmatprep.subr.mxu0 %v788
    %841 = vmatpush1.msra.mxu0 %v787
    %842 = vmatprep.subr.mxu0 %v791
    %843 = vmatpush1.msra.mxu0 %v790
    %844 = vmatprep.subr.mxu0 %v794
    %845 = vmatpush1.msra.mxu0 %v793
    %846 = vmatprep.subr.mxu0 0.0
    %847 = vmatpush1.msra.mxu0 0.0
    %848 = vmatprep.subr.mxu0 0.0
    %849 = vmatpush1.msra.mxu0 0.0
    %850 = vmatprep.subr.mxu0 0.0
    %851 = vmatpush1.msra.mxu0 0.0
    %852 = vmatprep.subr.mxu0 0.0
    %853 = vmatpush1.msra.mxu0 0.0
    %854 = vmatprep.subr.mxu0 0.0
    %855 = vmatpush1.msra.mxu0 0.0
    %856 = vmatprep.subr.mxu0 0.0
    %857 = vmatpush1.msra.mxu0 0.0
    %858 = vmatprep.subr.mxu0 0.0
    %859 = vmatpush1.msra.mxu0 0.0
    %860 = vmatprep.subr.mxu0 0.0
    %861 = vmatpush1.msra.mxu0 0.0
    %862 = vmatprep.subr.mxu0 0.0
    %863 = vmatpush1.msra.mxu0 0.0
    %864 = vmatprep.subr.mxu0 0.0
    %865 = vmatpush1.msra.mxu0 0.0
    %866 = vmatprep.subr.mxu0 0.0
    %867 = vmatpush1.msra.mxu0 0.0
    %868 = vmatprep.subr.mxu0 0.0
    %869 = vmatpush1.msra.mxu0 0.0
    %870 = vmatprep.subr.mxu0 0.0
    %871 = vmatpush1.msra.mxu0 0.0
    %872 = vmatprep.subr.mxu0 0.0
    %873 = vmatpush1.msra.mxu0 0.0
    %874 = vmatprep.subr.mxu0 0.0
    %875 = vmatpush1.msra.mxu0 0.0
    %876 = vmatprep.subr.mxu0 0.0
    %877 = vmatpush1.msra.mxu0 0.0
    %878 = vmatprep.mubr.f32.mxu0 0.0
    %879 = vmatmul.mubr.f32.gmra.mrb[0].mxu0 %v746
    %v880 = vpop.f32.mrb[0].mxu0
    %v881 = vadd.f32 %v802, %v880
    %v882 = vpop.f32.mrb[0].mxu0
    %v883 = vadd.f32 %v806, %v882
    %884 = vdwg.mxu0
    %885 = vmatprep.subr.mxu0 0.0
    %886 = vmatpush1.msra.mxu0 %v750
    %887 = vmatprep.subr.mxu0 0.0
    %888 = vmatpush1.msra.mxu0 %v753
    %889 = vmatprep.subr.mxu0 0.0
    %890 = vmatpush1.msra.mxu0 %v756
    %891 = vmatprep.subr.mxu0 0.0
    %892 = vmatpush1.msra.mxu0 %v759
    %893 = vmatprep.subr.mxu0 0.0
    %894 = vmatpush1.msra.mxu0 %v762
    %895 = vmatprep.subr.mxu0 0.0
    %896 = vmatpush1.msra.mxu0 %v765
    %897 = vmatprep.subr.mxu0 0.0
    %898 = vmatpush1.msra.mxu0 %v768
    %899 = vmatprep.subr.mxu0 0.0
    %900 = vmatpush1.msra.mxu0 %v771
    %901 = vmatprep.subr.mxu0 0.0
    %902 = vmatpush1.msra.mxu0 %v774
    %903 = vmatprep.subr.mxu0 0.0
    %904 = vmatpush1.msra.mxu0 %v777
    %905 = vmatprep.subr.mxu0 0.0
    %906 = vmatpush1.msra.mxu0 %v780
    %907 = vmatprep.subr.mxu0 0.0
    %908 = vmatpush1.msra.mxu0 %v783
    %909 = vmatprep.subr.mxu0 0.0
    %910 = vmatpush1.msra.mxu0 %v786
    %911 = vmatprep.subr.mxu0 0.0
    %912 = vmatpush1.msra.mxu0 %v789
    %913 = vmatprep.subr.mxu0 0.0
    %914 = vmatpush1.msra.mxu0 %v792
    %915 = vmatprep.subr.mxu0 0.0
    %916 = vmatpush1.msra.mxu0 %v795
    %917 = vmatprep.subr.mxu0 0.0
    %918 = vmatpush1.msra.mxu0 0.0
    %919 = vmatprep.subr.mxu0 0.0
    %920 = vmatpush1.msra.mxu0 0.0
    %921 = vmatprep.subr.mxu0 0.0
    %922 = vmatpush1.msra.mxu0 0.0
    %923 = vmatprep.subr.mxu0 0.0
    %924 = vmatpush1.msra.mxu0 0.0
    %925 = vmatprep.subr.mxu0 0.0
    %926 = vmatpush1.msra.mxu0 0.0
    %927 = vmatprep.subr.mxu0 0.0
    %928 = vmatpush1.msra.mxu0 0.0
    %929 = vmatprep.subr.mxu0 0.0
    %930 = vmatpush1.msra.mxu0 0.0
    %931 = vmatprep.subr.mxu0 0.0
    %932 = vmatpush1.msra.mxu0 0.0
    %933 = vmatprep.subr.mxu0 0.0
    %934 = vmatpush1.msra.mxu0 0.0
    %935 = vmatprep.subr.mxu0 0.0
    %936 = vmatpush1.msra.mxu0 0.0
    %937 = vmatprep.subr.mxu0 0.0
    %938 = vmatpush1.msra.mxu0 0.0
    %939 = vmatprep.subr.mxu0 0.0
    %940 = vmatpush1.msra.mxu0 0.0
    %941 = vmatprep.subr.mxu0 0.0
    %942 = vmatpush1.msra.mxu0 0.0
    %943 = vmatprep.subr.mxu0 0.0
    %944 = vmatpush1.msra.mxu0 0.0
    %945 = vmatprep.subr.mxu0 0.0
    %946 = vmatpush1.msra.mxu0 0.0
    %947 = vmatprep.subr.mxu0 0.0
    %948 = vmatpush1.msra.mxu0 0.0
    %949 = vmatprep.mubr.f32.mxu0 0.0
    %950 = vmatmul.mubr.f32.gmra.mrb[0].mxu0 %v746
    %v951 = vpop.f32.mrb[0].mxu0
    %v952 = vadd.f32 %v810, %v951
    %v953 = vpop.f32.mrb[0].mxu0
    %954 = vdwg.mxu0
    %v955 = vxor.u32 %v881, 2147483648
    %v956 = vxor.u32 %v883, 2147483648
    %v957 = vmul.f32 %v955, 1.442695
    %v958 = vpow.pop %v957
    %v959 = vmul.f32 %v956, 1.442695
    %v960 = vpow.pop %v959
    %v961 = vadd.f32 %v958, 1.0
    %v962 = vadd.f32 %v960, 1.0
    %v963 = vrcp.pop %v961
    %v964 = vmul.f32 1.0, %v963
    %v965 = vrcp.pop %v962
    %v966 = vmul.f32 1.0, %v965
    %v967 = vtanh.pop %v952
    %v968 = vmul.f32 %v964, %v967
    %v969 = vtanh.pop %v968
    %v970 = vmul.f32 %v966, %v969
    %v971 = vld [vmem:[%s7] sm:$0x1]
    %v973 = vlaneseq
    %v974 = vshrl.u32 %v973, 7
    %v975 = vsub.s32 0, %v974
    %v976 = vrot.slane %v971, %v975
    %v978 = vmul.f32 %v970, %v976
    %v979 = vld [vmem:[%s8] sm:$0x1]
    %v981 = vlaneseq
    %v982 = vshrl.u32 %v981, 7
    %v983 = vsub.s32 0, %v982
    %v984 = vrot.slane %v979, %v983
    %v986 = vadd.f32 %v978, %v984
    %v987 = vmax.f32 %v986, 0.0
    %v988 = vld [vmem:[%s9] sm:$0xff]
    %v989 = vld [vmem:[%s10] sm:$0xff]
    %991 = vset.pattern.permute.xlu0 0
    %992 = vperm.xlu0 %991, %v989
    %v993 = vpop.permute.xlu0 %992
    %995 = vmatprep.subr.mxu0 0.0
    %996 = vmatpush1.xpose.msra.mxu0 %v987
    %997 = vmatprep.subr.mxu0 0.0
    %998 = vmatpush1.xpose.msra.mxu0 0.0
    %999 = vmatprep.subr.mxu0 0.0
    %1000 = vmatpush1.xpose.msra.mxu0 0.0
    %1001 = vmatprep.subr.mxu0 0.0
    %1002 = vmatpush1.xpose.msra.mxu0 0.0
    %1003 = vmatprep.subr.mxu0 0.0
    %1004 = vmatpush1.xpose.msra.mxu0 0.0
    %1005 = vmatprep.subr.mxu0 0.0
    %1006 = vmatpush1.xpose.msra.mxu0 0.0
    %1007 = vmatprep.subr.mxu0 0.0
    %1008 = vmatpush1.xpose.msra.mxu0 0.0
    %1009 = vmatprep.subr.mxu0 0.0
    %1010 = vmatpush1.xpose.msra.mxu0 0.0
    %1011 = vmatprep.subr.mxu0 0.0
    %1012 = vmatpush1.xpose.msra.mxu0 0.0
    %1013 = vmatprep.subr.mxu0 0.0
    %1014 = vmatpush1.xpose.msra.mxu0 0.0
    %1015 = vmatprep.subr.mxu0 0.0
    %1016 = vmatpush1.xpose.msra.mxu0 0.0
    %1017 = vmatprep.subr.mxu0 0.0
    %1018 = vmatpush1.xpose.msra.mxu0 0.0
    %1019 = vmatprep.subr.mxu0 0.0
    %1020 = vmatpush1.xpose.msra.mxu0 0.0
    %1021 = vmatprep.subr.mxu0 0.0
    %1022 = vmatpush1.xpose.msra.mxu0 0.0
    %1023 = vmatprep.subr.mxu0 0.0
    %1024 = vmatpush1.xpose.msra.mxu0 0.0
    %1025 = vmatprep.subr.mxu0 0.0
    %1026 = vmatpush1.xpose.msra.mxu0 0.0
    %1027 = vmatprep.subr.mxu0 0.0
    %1028 = vmatpush1.xpose.msra.mxu0 0.0
    %1029 = vmatprep.subr.mxu0 0.0
    %1030 = vmatpush1.xpose.msra.mxu0 0.0
    %1031 = vmatprep.subr.mxu0 0.0
    %1032 = vmatpush1.xpose.msra.mxu0 0.0
    %1033 = vmatprep.subr.mxu0 0.0
    %1034 = vmatpush1.xpose.msra.mxu0 0.0
    %1035 = vmatprep.subr.mxu0 0.0
    %1036 = vmatpush1.xpose.msra.mxu0 0.0
    %1037 = vmatprep.subr.mxu0 0.0
    %1038 = vmatpush1.xpose.msra.mxu0 0.0
    %1039 = vmatprep.subr.mxu0 0.0
    %1040 = vmatpush1.xpose.msra.mxu0 0.0
    %1041 = vmatprep.subr.mxu0 0.0
    %1042 = vmatpush1.xpose.msra.mxu0 0.0
    %1043 = vmatprep.subr.mxu0 0.0
    %1044 = vmatpush1.xpose.msra.mxu0 0.0
    %1045 = vmatprep.subr.mxu0 0.0
    %1046 = vmatpush1.xpose.msra.mxu0 0.0
    %1047 = vmatprep.subr.mxu0 0.0
    %1048 = vmatpush1.xpose.msra.mxu0 0.0
    %1049 = vmatprep.subr.mxu0 0.0
    %1050 = vmatpush1.xpose.msra.mxu0 0.0
    %1051 = vmatprep.subr.mxu0 0.0
    %1052 = vmatpush1.xpose.msra.mxu0 0.0
    %1053 = vmatprep.subr.mxu0 0.0
    %1054 = vmatpush1.xpose.msra.mxu0 0.0
    %1055 = vmatprep.subr.mxu0 0.0
    %1056 = vmatpush1.xpose.msra.mxu0 0.0
    %1057 = vmatprep.subr.mxu0 0.0
    %1058 = vmatpush1.xpose.msra.mxu0 0.0
    %1059 = vmatprep.mubr.f32.mxu0 0.0
    %1060 = vmatmul.mubr.f32.gmra.mrb[0].mxu0 %v988
    %v1061 = vpop.f32.mrb[0].mxu0
    %v1062 = vadd.f32 %v993, %v1061
    %v1063 = vpop.f32.mrb[0].mxu0
    %1064 = vdwg.mxu0
    %1065 = vst.msk [vmem:[#allocation11] sm:$0xff] %vm203, %v1062
    // Predicated region
    $region66: #{tpu_custom_call.1} parent=1 // pred_check
      _
    $region67: #{tpu_custom_call.1} parent=1 // pred_check_branch
      %1067 = sbr.rel (0) target = $region69
    $region68: #{tpu_custom_call.1} parent=1 // pred_region
      %s1069 = ssub.s32 128, 128
      %1070 = vsyncadd [#allocation4], %s1069
      %s1072 = sshll.u32 [#allocation11], 4
      %s1073 = int_to_ptr.vmem [resolvable:$true] %s1072
      %1075 = dma.vmem_to_hbm [thread:$0]  %s1073, 128, %s11, [#allocation4]
    $region69: #{tpu_custom_call.1} parent=1 // pred_fallthru
      _
    // Predicated region
    $region70: #{tpu_custom_call.1} parent=1 // pred_check
      _
    $region71: #{tpu_custom_call.1} parent=1 // pred_check_branch
      %1077 = sbr.rel (0) target = $region73
    $region72: #{tpu_custom_call.1} parent=1 // pred_region
      %1078 = dma.done [#allocation4], 128
    $region73: #{tpu_custom_call.1} parent=1 // pred_fallthru
      _
    %1079 = vsyncpa [#allocation3], 1
    %1080 = vsyncpa [#allocation6], 1
    %1081 = vsyncpa [#allocation9], 1
    %1082 = vsyncpa [#allocation4], 1

</llo_original>
